<compile_context>
chip_gen: v5e
topology: v5e:2x2
jax: 0.10.0
libtpu: 0.0.40
codegen_flags: <defaults>
</compile_context>

<pallas_src>
import math

import jax
import jax.numpy as jnp
import numpy as np
from jax import lax
from jax.experimental import pallas as pl
from jax.experimental.pallas import tpu as pltpu


# ----------------------------- config --------------------------------------
B = 2            # batch
S = 8            # seq length (num_tokens)
E = 32           # emb_dim
H = 4            # n_heads
D = E // H       # head_dim
HALF = D // 2
FF = 64          # hidden_dim of the feed-forward
CTX = 16         # context_length (>= S)
EPS = 1e-5
THETA = 10000.0
NEG_BIG = -1e30
SCALE = 1.0 / math.sqrt(D)


# ------------------------- static RoPE tables --------------------------------
def make_rope_tables():
    """(S, D) cos/sin tables (registered-buffer style); broadcast in-kernel."""
    inv_freq = 1.0 / THETA ** (
        np.arange(0, D, 2, dtype=np.float32)[: D // 2] / D)
    positions = np.arange(CTX, dtype=np.float32)
    angles = positions[:, None] * inv_freq[None, :]
    angles = np.concatenate([angles, angles], axis=1)            # (CTX, D)
    cos = np.cos(angles)[:S].astype(np.float32)                  # (S, D)
    sin = np.sin(angles)[:S].astype(np.float32)                  # (S, D)
    return jnp.asarray(cos), jnp.asarray(sin)


# ------------------------------- kernel -------------------------------------
def transformer_block_kernel(
    x_ref,                      # (S, E)    f32  activations (one batch element)
    wq_ref, wk_ref, wv_ref,     # (H, E, D) bf16 head-split QKV weights
    wo_ref,                     # (H, D, E) bf16 head-split out_proj weight
    bo_ref,                     # (1, E)    f32  out_proj bias
    n1_ref, n2_ref,             # (1, E)    f32  RMSNorm weights
    w1_ref, w2_ref,             # (E, FF)   bf16 FF fc1 / fc2
    w3_ref,                     # (FF, E)   bf16 FF fc3
    cos_ref, sin_ref,           # (S, D)    f32  RoPE tables
    o_ref,                      # (S, E)    f32
):
    x = x_ref[...]                                       # (S, E) f32

    # ---- RMSNorm 1 (f32 elementwise, VPU) ----
    ms = jnp.mean(x * x, axis=-1, keepdims=True)
    xn = x * lax.rsqrt(ms + EPS) * n1_ref[...]

    # ---- head-batched QKV projections: bf16 MXU operands, f32 accumulate ----
    xn_b = jnp.broadcast_to(xn.astype(jnp.bfloat16), (H, S, E))
    q = jnp.einsum("hse,hed->hsd", xn_b, wq_ref[...],
                   preferred_element_type=jnp.float32)   # (H, S, D)
    k = jnp.einsum("hse,hed->hsd", xn_b, wk_ref[...],
                   preferred_element_type=jnp.float32)
    v = jnp.einsum("hse,hed->hsd", xn_b, wv_ref[...],
                   preferred_element_type=jnp.float32)

    # ---- RoPE: lane-level half rotation fused with cos/sin (no rot matmul) ----
    cos = cos_ref[...]                                   # (S, D), broadcasts over H
    sin = sin_ref[...]

    def rope(t):
        t1 = t[..., :HALF]
        t2 = t[..., HALF:]
        rot = jnp.concatenate([-t2, t1], axis=-1)
        return t * cos + rot * sin

    q = rope(q) * SCALE          # fold softmax 1/sqrt(D) into q once
    k = rope(k)

    # ---- batched attention over all heads (2 batched matmuls, not 8 tiny) ----
    s = jnp.einsum("hqd,hkd->hqk",
                   q.astype(jnp.bfloat16), k.astype(jnp.bfloat16),
                   preferred_element_type=jnp.float32)   # (H, S, S)
    row = lax.broadcasted_iota(jnp.int32, (S, S), 0)
    col = lax.broadcasted_iota(jnp.int32, (S, S), 1)
    s = jnp.where((col <= row)[None, :, :], s, NEG_BIG)  # in-kernel causal mask

    m = jnp.max(s, axis=-1, keepdims=True)
    e = jnp.exp(s - m)
    p = e * pl.reciprocal(jnp.sum(e, axis=-1, keepdims=True), approx=True)

    ctx = jnp.einsum("hqk,hkd->hqd",
                     p.astype(jnp.bfloat16), v.astype(jnp.bfloat16),
                     preferred_element_type=jnp.float32)  # (H, S, D)

    # ---- out projection: head-batched matmul + reduce over heads ----
    attn = jnp.einsum("hsd,hde->hse",
                      ctx.astype(jnp.bfloat16), wo_ref[...],
                      preferred_element_type=jnp.float32)  # (H, S, E)
    h1 = jnp.sum(attn, axis=0) + bo_ref[...] + x           # bias + residual 1

    # ---- RMSNorm 2 ----
    ms2 = jnp.mean(h1 * h1, axis=-1, keepdims=True)
    xn2 = h1 * lax.rsqrt(ms2 + EPS) * n2_ref[...]

    # ---- SwiGLU feed-forward (bf16 MXU, f32 elementwise) + residual 2 ----
    xn2b = xn2.astype(jnp.bfloat16)
    a = jnp.dot(xn2b, w1_ref[...], preferred_element_type=jnp.float32)
    b = jnp.dot(xn2b, w2_ref[...], preferred_element_type=jnp.float32)
    g = (a * jax.nn.sigmoid(a)) * b
    ff = jnp.dot(g.astype(jnp.bfloat16), w3_ref[...],
                 preferred_element_type=jnp.float32)

    # TODO(synk): at real Llama2 widths restructure into a flash-attention-style
    # pipelined grid (q-tiles "parallel", kv-tiles "arbitrary" last, K-tiled FF
    # matmuls, >=256-wide MXU tiles on v6e/v7x, lane-dense >=128 output last
    # dim, weight tiles sized for v7x's 64 MiB VMEM) instead of whole-array
    # weights resident in VMEM; at E=32/S=8 everything fits trivially.
    o_ref[...] = ff + h1


# ------------------------------ wrapper -------------------------------------
@jax.jit
def transformer_block(x, params, cos_sd, sin_sd):
    wq, wk, wv, wo, bo, n1, n2, w1, w2, w3 = params

    # Head-split + bf16 weight layout (pure layout plumbing on tiny constant
    # weights, outside the kernel; halves weight HBM->VMEM DMA bytes).
    wq_h = wq.reshape(E, H, D).transpose(1, 0, 2).astype(jnp.bfloat16)  # (H,E,D)
    wk_h = wk.reshape(E, H, D).transpose(1, 0, 2).astype(jnp.bfloat16)
    wv_h = wv.reshape(E, H, D).transpose(1, 0, 2).astype(jnp.bfloat16)
    wo_h = wo.reshape(H, D, E).astype(jnp.bfloat16)                     # (H,D,E)
    w1b = w1.astype(jnp.bfloat16)
    w2b = w2.astype(jnp.bfloat16)
    w3b = w3.astype(jnp.bfloat16)

    rep3 = lambda b: (0, 0, 0)   # weights: same block every grid step (DMA once)
    rep2 = lambda b: (0, 0)

    return pl.pallas_call(
        transformer_block_kernel,
        out_shape=jax.ShapeDtypeStruct((B, S, E), jnp.float32),
        grid=(B,),
        in_specs=[
            pl.BlockSpec((None, S, E), lambda b: (b, 0, 0)),   # x (per batch)
            pl.BlockSpec((H, E, D), rep3),                     # wq
            pl.BlockSpec((H, E, D), rep3),                     # wk
            pl.BlockSpec((H, E, D), rep3),                     # wv
            pl.BlockSpec((H, D, E), rep3),                     # wo
            pl.BlockSpec((1, E), rep2),                        # out_proj bias
            pl.BlockSpec((1, E), rep2),                        # norm1 weight
            pl.BlockSpec((1, E), rep2),                        # norm2 weight
            pl.BlockSpec((E, FF), rep2),                       # fc1
            pl.BlockSpec((E, FF), rep2),                       # fc2
            pl.BlockSpec((FF, E), rep2),                       # fc3
            pl.BlockSpec((S, D), rep2),                        # cos
            pl.BlockSpec((S, D), rep2),                        # sin
        ],
        out_specs=pl.BlockSpec((None, S, E), lambda b: (b, 0, 0)),
        compiler_params=pltpu.CompilerParams(
            dimension_semantics=("parallel",)),                # v7x: shard batch
    )(x, wq_h, wk_h, wv_h, wo_h, bo, n1, n2, w1b, w2b, w3b, cos_sd, sin_sd)


# --------------------------- pure-JAX reference ------------------------------
def reference_block(x, params, cos, sin):
    wq, wk, wv, wo, bo, n1, n2, w1, w2, w3 = params

    def rmsnorm(t, w):
        ms = jnp.mean(t * t, axis=-1, keepdims=True)
        return t * lax.rsqrt(ms + EPS) * w

    def rope(t):  # t: (B, H, S, D)
        t1, t2 = t[..., :HALF], t[..., HALF:]
        rotd = jnp.concatenate([-t2, t1], axis=-1)
        return t * cos[None, None] + rotd * sin[None, None]

    shortcut = x
    xn = rmsnorm(x, n1)
    q = (xn @ wq).reshape(B, S, H, D).transpose(0, 2, 1, 3)
    k = (xn @ wk).reshape(B, S, H, D).transpose(0, 2, 1, 3)
    v = (xn @ wv).reshape(B, S, H, D).transpose(0, 2, 1, 3)
    q, k = rope(q), rope(k)
    scores = jnp.einsum("bhqd,bhkd->bhqk", q, k)
    mask = jnp.triu(jnp.ones((S, S), dtype=bool), k=1)
    scores = jnp.where(mask[None, None], -jnp.inf, scores)
    w = jax.nn.softmax(scores / math.sqrt(D), axis=-1)
    ctx = jnp.einsum("bhqk,bhkd->bhqd", w, v).transpose(0, 2, 1, 3).reshape(B, S, E)
    attn = ctx @ wo + bo
    x1 = attn + shortcut

    xn2 = rmsnorm(x1, n2)
    a, b_ = xn2 @ w1, xn2 @ w2
    ff = ((a * jax.nn.sigmoid(a)) * b_) @ w3
    return ff + x1


# --------------------------------- main --------------------------------------
if __name__ == "__main__":
    key = jax.random.PRNGKey(0)
    ks = jax.random.split(key, 12)

    def init(k, shape, scale=0.1):
        return jax.random.normal(k, shape, dtype=jnp.float32) * scale

    x = jax.random.normal(ks[0], (B, S, E), dtype=jnp.float32)

    wq = init(ks[1], (E, E))
    wk = init(ks[2], (E, E))
    wv = init(ks[3], (E, E))
    wo = init(ks[4], (E, E))
    bo = init(ks[5], (1, E))
    n1 = jnp.ones((1, E), dtype=jnp.float32) + init(ks[6], (1, E), 0.05)
    n2 = jnp.ones((1, E), dtype=jnp.float32) + init(ks[7], (1, E), 0.05)
    w1 = init(ks[8], (E, FF))
    w2 = init(ks[9], (E, FF))
    w3 = init(ks[10], (FF, E))
    params = (wq, wk, wv, wo, bo, n1, n2, w1, w2, w3)

    cos_sd, sin_sd = make_rope_tables()

    out = jax.block_until_ready(transformer_block(x, params, cos_sd, sin_sd))
    ref = jax.block_until_ready(reference_block(x, params, cos_sd, sin_sd))
    np.testing.assert_allclose(np.asarray(out), np.asarray(ref), rtol=2e-2, atol=2e-2)

    print("KERNEL_OK")
</pallas_src>

<mosaic_0001>
module attributes {stable_mosaic.version = 11 : i64} {
  func.func @transformer_block_kernel(%arg0: i32, %arg1: memref<1x8x32xf32, #tpu.memory_space<vmem>>, %arg2: memref<4x32x8xbf16, #tpu.memory_space<vmem>>, %arg3: memref<4x32x8xbf16, #tpu.memory_space<vmem>>, %arg4: memref<4x32x8xbf16, #tpu.memory_space<vmem>>, %arg5: memref<4x8x32xbf16, #tpu.memory_space<vmem>>, %arg6: memref<1x32xf32, #tpu.memory_space<vmem>>, %arg7: memref<1x32xf32, #tpu.memory_space<vmem>>, %arg8: memref<1x32xf32, #tpu.memory_space<vmem>>, %arg9: memref<32x64xbf16, #tpu.memory_space<vmem>>, %arg10: memref<32x64xbf16, #tpu.memory_space<vmem>>, %arg11: memref<64x32xbf16, #tpu.memory_space<vmem>>, %arg12: memref<8x8xf32, #tpu.memory_space<vmem>>, %arg13: memref<8x8xf32, #tpu.memory_space<vmem>>, %arg14: memref<1x8x32xf32, #tpu.memory_space<vmem>>) attributes {dimension_semantics = [#tpu.dimension_semantics<parallel>], iteration_bounds = array<i64: 2>, scalar_prefetch = 0 : i64, scratch_operands = 0 : i64, tpu.core_type = #tpu.core_type<tc>, window_params = [{transform_indices = @transform_0, window_bounds = array<i64: 1, 8, 32>}, {pipeline_mode = #tpu.pipeline_mode<synchronous>, transform_indices = @transform_1, window_bounds = array<i64: 4, 32, 8>}, {pipeline_mode = #tpu.pipeline_mode<synchronous>, transform_indices = @transform_2, window_bounds = array<i64: 4, 32, 8>}, {pipeline_mode = #tpu.pipeline_mode<synchronous>, transform_indices = @transform_3, window_bounds = array<i64: 4, 32, 8>}, {pipeline_mode = #tpu.pipeline_mode<synchronous>, transform_indices = @transform_4, window_bounds = array<i64: 4, 8, 32>}, {pipeline_mode = #tpu.pipeline_mode<synchronous>, transform_indices = @transform_5, window_bounds = array<i64: 1, 32>}, {pipeline_mode = #tpu.pipeline_mode<synchronous>, transform_indices = @transform_6, window_bounds = array<i64: 1, 32>}, {pipeline_mode = #tpu.pipeline_mode<synchronous>, transform_indices = @transform_7, window_bounds = array<i64: 1, 32>}, {pipeline_mode = #tpu.pipeline_mode<synchronous>, transform_indices = @transform_8, window_bounds = array<i64: 32, 64>}, {pipeline_mode = #tpu.pipeline_mode<synchronous>, transform_indices = @transform_9, window_bounds = array<i64: 32, 64>}, {pipeline_mode = #tpu.pipeline_mode<synchronous>, transform_indices = @transform_10, window_bounds = array<i64: 64, 32>}, {pipeline_mode = #tpu.pipeline_mode<synchronous>, transform_indices = @transform_11, window_bounds = array<i64: 8, 8>}, {pipeline_mode = #tpu.pipeline_mode<synchronous>, transform_indices = @transform_12, window_bounds = array<i64: 8, 8>}, {transform_indices = @transform_13, window_bounds = array<i64: 1, 8, 32>}]} {
    %c0 = arith.constant 0 : index
    %c0_0 = arith.constant 0 : index
    %c0_1 = arith.constant 0 : index
    %0 = vector.load %arg1[%c0, %c0_0, %c0_1] : memref<1x8x32xf32, #tpu.memory_space<vmem>>, vector<1x8x32xf32>
    %1 = vector.shape_cast %0 : vector<1x8x32xf32> to vector<8x32xf32>
    %2 = arith.mulf %1, %1 : vector<8x32xf32>
    %cst = arith.constant dense<0.000000e+00> : vector<8xf32>
    %3 = vector.multi_reduction <add>, %2, %cst [1] : vector<8x32xf32> to vector<8xf32>
    %4 = vector.shape_cast %3 : vector<8xf32> to vector<8x1xf32>
    %cst_2 = arith.constant 3.200000e+01 : f32
    %5 = vector.broadcast %cst_2 : f32 to vector<8x1xf32>
    %6 = arith.divf %4, %5 : vector<8x1xf32>
    %cst_3 = arith.constant 9.99999974E-6 : f32
    %7 = vector.broadcast %cst_3 : f32 to vector<8x1xf32>
    %8 = arith.addf %6, %7 : vector<8x1xf32>
    %9 = math.rsqrt %8 : vector<8x1xf32>
    %10 = vector.broadcast %9 : vector<8x1xf32> to vector<8x32xf32>
    %11 = arith.mulf %1, %10 : vector<8x32xf32>
    %c0_4 = arith.constant 0 : index
    %c0_5 = arith.constant 0 : index
    %12 = vector.load %arg7[%c0_4, %c0_5] : memref<1x32xf32, #tpu.memory_space<vmem>>, vector<1x32xf32>
    %13 = vector.broadcast %12 : vector<1x32xf32> to vector<8x32xf32>
    %14 = arith.mulf %11, %13 : vector<8x32xf32>
    %15 = arith.truncf %14 : vector<8x32xf32> to vector<8x32xbf16>
    %16 = vector.shape_cast %15 : vector<8x32xbf16> to vector<1x8x32xbf16>
    %17 = vector.broadcast %16 : vector<1x8x32xbf16> to vector<4x8x32xbf16>
    %c0_6 = arith.constant 0 : index
    %c0_7 = arith.constant 0 : index
    %c0_8 = arith.constant 0 : index
    %18 = vector.load %arg2[%c0_6, %c0_7, %c0_8] : memref<4x32x8xbf16, #tpu.memory_space<vmem>>, vector<4x32x8xbf16>
    "tpu.trace_start"() <{level = 10 : i32, message = "hse,hed->hsd"}> : () -> ()
    %cst_9 = arith.constant dense<0.000000e+00> : vector<4x8x8xf32>
    %19 = tpu.matmul %17, %18, %cst_9 {dimension_numbers = #tpu.dot_dimension_numbers<[2], [1], [1], [2], [0, 0, 0, 1, 1, 2], [0], [0]>} : vector<4x8x32xbf16>, vector<4x32x8xbf16>, vector<4x8x8xf32> -> vector<4x8x8xf32>
    "tpu.trace_stop"() : () -> ()
    %c0_10 = arith.constant 0 : index
    %c0_11 = arith.constant 0 : index
    %c0_12 = arith.constant 0 : index
    %20 = vector.load %arg3[%c0_10, %c0_11, %c0_12] : memref<4x32x8xbf16, #tpu.memory_space<vmem>>, vector<4x32x8xbf16>
    "tpu.trace_start"() <{level = 10 : i32, message = "hse,hed->hsd"}> : () -> ()
    %cst_13 = arith.constant dense<0.000000e+00> : vector<4x8x8xf32>
    %21 = tpu.matmul %17, %20, %cst_13 {dimension_numbers = #tpu.dot_dimension_numbers<[2], [1], [1], [2], [0, 0, 0, 1, 1, 2], [0], [0]>} : vector<4x8x32xbf16>, vector<4x32x8xbf16>, vector<4x8x8xf32> -> vector<4x8x8xf32>
    "tpu.trace_stop"() : () -> ()
    %c0_14 = arith.constant 0 : index
    %c0_15 = arith.constant 0 : index
    %c0_16 = arith.constant 0 : index
    %22 = vector.load %arg4[%c0_14, %c0_15, %c0_16] : memref<4x32x8xbf16, #tpu.memory_space<vmem>>, vector<4x32x8xbf16>
    "tpu.trace_start"() <{level = 10 : i32, message = "hse,hed->hsd"}> : () -> ()
    %cst_17 = arith.constant dense<0.000000e+00> : vector<4x8x8xf32>
    %23 = tpu.matmul %17, %22, %cst_17 {dimension_numbers = #tpu.dot_dimension_numbers<[2], [1], [1], [2], [0, 0, 0, 1, 1, 2], [0], [0]>} : vector<4x8x32xbf16>, vector<4x32x8xbf16>, vector<4x8x8xf32> -> vector<4x8x8xf32>
    "tpu.trace_stop"() : () -> ()
    %c0_18 = arith.constant 0 : index
    %c0_19 = arith.constant 0 : index
    %24 = vector.load %arg12[%c0_18, %c0_19] : memref<8x8xf32, #tpu.memory_space<vmem>>, vector<8x8xf32>
    %c0_20 = arith.constant 0 : index
    %c0_21 = arith.constant 0 : index
    %25 = vector.load %arg13[%c0_20, %c0_21] : memref<8x8xf32, #tpu.memory_space<vmem>>, vector<8x8xf32>
    %26 = vector.extract_strided_slice %19 {offsets = [0, 0, 0], sizes = [4, 8, 4], strides = [1, 1, 1]} : vector<4x8x8xf32> to vector<4x8x4xf32>
    %27 = vector.extract_strided_slice %19 {offsets = [0, 0, 4], sizes = [4, 8, 4], strides = [1, 1, 1]} : vector<4x8x8xf32> to vector<4x8x4xf32>
    %cst_22 = arith.constant 0.000000e+00 : f32
    %28 = vector.broadcast %cst_22 : f32 to vector<4x8x4xf32>
    %29 = arith.subf %28, %27 : vector<4x8x4xf32>
    %30 = tpu.concatenate %29, %26 in 2 : vector<4x8x4xf32>, vector<4x8x4xf32> -> vector<4x8x8xf32>
    %31 = vector.shape_cast %24 : vector<8x8xf32> to vector<1x8x8xf32>
    %32 = vector.broadcast %31 : vector<1x8x8xf32> to vector<4x8x8xf32>
    %33 = arith.mulf %19, %32 : vector<4x8x8xf32>
    %34 = vector.shape_cast %25 : vector<8x8xf32> to vector<1x8x8xf32>
    %35 = vector.broadcast %34 : vector<1x8x8xf32> to vector<4x8x8xf32>
    %36 = arith.mulf %30, %35 : vector<4x8x8xf32>
    %37 = arith.addf %33, %36 : vector<4x8x8xf32>
    %cst_23 = arith.constant 0.353553385 : f32
    %38 = vector.broadcast %cst_23 : f32 to vector<4x8x8xf32>
    %39 = arith.mulf %37, %38 : vector<4x8x8xf32>
    %40 = vector.extract_strided_slice %21 {offsets = [0, 0, 0], sizes = [4, 8, 4], strides = [1, 1, 1]} : vector<4x8x8xf32> to vector<4x8x4xf32>
    %41 = vector.extract_strided_slice %21 {offsets = [0, 0, 4], sizes = [4, 8, 4], strides = [1, 1, 1]} : vector<4x8x8xf32> to vector<4x8x4xf32>
    %cst_24 = arith.constant 0.000000e+00 : f32
    %42 = vector.broadcast %cst_24 : f32 to vector<4x8x4xf32>
    %43 = arith.subf %42, %41 : vector<4x8x4xf32>
    %44 = tpu.concatenate %43, %40 in 2 : vector<4x8x4xf32>, vector<4x8x4xf32> -> vector<4x8x8xf32>
    %45 = vector.shape_cast %24 : vector<8x8xf32> to vector<1x8x8xf32>
    %46 = vector.broadcast %45 : vector<1x8x8xf32> to vector<4x8x8xf32>
    %47 = arith.mulf %21, %46 : vector<4x8x8xf32>
    %48 = vector.shape_cast %25 : vector<8x8xf32> to vector<1x8x8xf32>
    %49 = vector.broadcast %48 : vector<1x8x8xf32> to vector<4x8x8xf32>
    %50 = arith.mulf %44, %49 : vector<4x8x8xf32>
    %51 = arith.addf %47, %50 : vector<4x8x8xf32>
    %52 = arith.truncf %39 : vector<4x8x8xf32> to vector<4x8x8xbf16>
    %53 = arith.truncf %51 : vector<4x8x8xf32> to vector<4x8x8xbf16>
    "tpu.trace_start"() <{level = 10 : i32, message = "hqd,hkd->hqk"}> : () -> ()
    %cst_25 = arith.constant dense<0.000000e+00> : vector<4x8x8xf32>
    %54 = tpu.matmul %52, %53, %cst_25 {dimension_numbers = #tpu.dot_dimension_numbers<[2], [2], [1], [1], [0, 0, 0, 1, 1, 1], [0], [0]>} : vector<4x8x8xbf16>, vector<4x8x8xbf16>, vector<4x8x8xf32> -> vector<4x8x8xf32>
    "tpu.trace_stop"() : () -> ()
    %55 = tpu.iota {dimensions = array<i32: 0>} : vector<8x8xi32>
    %56 = tpu.iota {dimensions = array<i32: 1>} : vector<8x8xi32>
    %57 = arith.cmpi sle, %56, %55 : vector<8x8xi32>
    %58 = vector.shape_cast %57 : vector<8x8xi1> to vector<1x8x8xi1>
    %cst_26 = arith.constant -1.000000e+30 : f32
    %59 = vector.shape_cast %58 : vector<1x8x8xi1> to vector<1x8x8xi1>
    %60 = vector.broadcast %59 : vector<1x8x8xi1> to vector<4x8x8xi1>
    %61 = vector.broadcast %cst_26 : f32 to vector<4x8x8xf32>
    %62 = arith.select %60, %54, %61 : vector<4x8x8xi1>, vector<4x8x8xf32>
    %cst_27 = arith.constant dense<0xFF800000> : vector<4x8xf32>
    %63 = vector.multi_reduction <maximumf>, %62, %cst_27 [2] : vector<4x8x8xf32> to vector<4x8xf32>
    %64 = vector.shape_cast %63 : vector<4x8xf32> to vector<4x8x1xf32>
    %65 = vector.broadcast %64 : vector<4x8x1xf32> to vector<4x8x8xf32>
    %66 = arith.subf %62, %65 : vector<4x8x8xf32>
    %67 = math.exp %66 : vector<4x8x8xf32>
    %cst_28 = arith.constant dense<0.000000e+00> : vector<4x8xf32>
    %68 = vector.multi_reduction <add>, %67, %cst_28 [2] : vector<4x8x8xf32> to vector<4x8xf32>
    %69 = vector.shape_cast %68 : vector<4x8xf32> to vector<4x8x1xf32>
    %70 = tpu.reciprocal %69 {approx = true} : vector<4x8x1xf32> -> vector<4x8x1xf32>
    %71 = vector.broadcast %70 : vector<4x8x1xf32> to vector<4x8x8xf32>
    %72 = arith.mulf %67, %71 : vector<4x8x8xf32>
    %73 = arith.truncf %72 : vector<4x8x8xf32> to vector<4x8x8xbf16>
    %74 = arith.truncf %23 : vector<4x8x8xf32> to vector<4x8x8xbf16>
    "tpu.trace_start"() <{level = 10 : i32, message = "hqk,hkd->hqd"}> : () -> ()
    %cst_29 = arith.constant dense<0.000000e+00> : vector<4x8x8xf32>
    %75 = tpu.matmul %73, %74, %cst_29 {dimension_numbers = #tpu.dot_dimension_numbers<[2], [1], [1], [2], [0, 0, 0, 1, 1, 2], [0], [0]>} : vector<4x8x8xbf16>, vector<4x8x8xbf16>, vector<4x8x8xf32> -> vector<4x8x8xf32>
    "tpu.trace_stop"() : () -> ()
    %76 = arith.truncf %75 : vector<4x8x8xf32> to vector<4x8x8xbf16>
    %c0_30 = arith.constant 0 : index
    %c0_31 = arith.constant 0 : index
    %c0_32 = arith.constant 0 : index
    %77 = vector.load %arg5[%c0_30, %c0_31, %c0_32] : memref<4x8x32xbf16, #tpu.memory_space<vmem>>, vector<4x8x32xbf16>
    "tpu.trace_start"() <{level = 10 : i32, message = "hsd,hde->hse"}> : () -> ()
    %cst_33 = arith.constant dense<0.000000e+00> : vector<4x8x32xf32>
    %78 = tpu.matmul %76, %77, %cst_33 {dimension_numbers = #tpu.dot_dimension_numbers<[2], [1], [1], [2], [0, 0, 0, 1, 1, 2], [0], [0]>} : vector<4x8x8xbf16>, vector<4x8x32xbf16>, vector<4x8x32xf32> -> vector<4x8x32xf32>
    "tpu.trace_stop"() : () -> ()
    %cst_34 = arith.constant dense<0.000000e+00> : vector<8x32xf32>
    %79 = vector.multi_reduction <add>, %78, %cst_34 [0] : vector<4x8x32xf32> to vector<8x32xf32>
    %c0_35 = arith.constant 0 : index
    %c0_36 = arith.constant 0 : index
    %80 = vector.load %arg6[%c0_35, %c0_36] : memref<1x32xf32, #tpu.memory_space<vmem>>, vector<1x32xf32>
    %81 = vector.broadcast %80 : vector<1x32xf32> to vector<8x32xf32>
    %82 = arith.addf %79, %81 : vector<8x32xf32>
    %83 = arith.addf %82, %1 : vector<8x32xf32>
    %84 = arith.mulf %83, %83 : vector<8x32xf32>
    %cst_37 = arith.constant dense<0.000000e+00> : vector<8xf32>
    %85 = vector.multi_reduction <add>, %84, %cst_37 [1] : vector<8x32xf32> to vector<8xf32>
    %86 = vector.shape_cast %85 : vector<8xf32> to vector<8x1xf32>
    %cst_38 = arith.constant 3.200000e+01 : f32
    %87 = vector.broadcast %cst_38 : f32 to vector<8x1xf32>
    %88 = arith.divf %86, %87 : vector<8x1xf32>
    %cst_39 = arith.constant 9.99999974E-6 : f32
    %89 = vector.broadcast %cst_39 : f32 to vector<8x1xf32>
    %90 = arith.addf %88, %89 : vector<8x1xf32>
    %91 = math.rsqrt %90 : vector<8x1xf32>
    %92 = vector.broadcast %91 : vector<8x1xf32> to vector<8x32xf32>
    %93 = arith.mulf %83, %92 : vector<8x32xf32>
    %c0_40 = arith.constant 0 : index
    %c0_41 = arith.constant 0 : index
    %94 = vector.load %arg8[%c0_40, %c0_41] : memref<1x32xf32, #tpu.memory_space<vmem>>, vector<1x32xf32>
    %95 = vector.broadcast %94 : vector<1x32xf32> to vector<8x32xf32>
    %96 = arith.mulf %93, %95 : vector<8x32xf32>
    %97 = arith.truncf %96 : vector<8x32xf32> to vector<8x32xbf16>
    %c0_42 = arith.constant 0 : index
    %c0_43 = arith.constant 0 : index
    %98 = vector.load %arg9[%c0_42, %c0_43] : memref<32x64xbf16, #tpu.memory_space<vmem>>, vector<32x64xbf16>
    %cst_44 = arith.constant dense<0.000000e+00> : vector<8x64xf32>
    %99 = tpu.matmul %97, %98, %cst_44 {dimension_numbers = #tpu.dot_dimension_numbers<[1], [0], [0], [1], [0, 0, 1, 1], [], []>} : vector<8x32xbf16>, vector<32x64xbf16>, vector<8x64xf32> -> vector<8x64xf32>
    %c0_45 = arith.constant 0 : index
    %c0_46 = arith.constant 0 : index
    %100 = vector.load %arg10[%c0_45, %c0_46] : memref<32x64xbf16, #tpu.memory_space<vmem>>, vector<32x64xbf16>
    %cst_47 = arith.constant dense<0.000000e+00> : vector<8x64xf32>
    %101 = tpu.matmul %97, %100, %cst_47 {dimension_numbers = #tpu.dot_dimension_numbers<[1], [0], [0], [1], [0, 0, 1, 1], [], []>} : vector<8x32xbf16>, vector<32x64xbf16>, vector<8x64xf32> -> vector<8x64xf32>
    %102 = arith.negf %99 : vector<8x64xf32>
    %103 = math.exp %102 : vector<8x64xf32>
    %cst_48 = arith.constant 1.000000e+00 : f32
    %104 = vector.broadcast %cst_48 : f32 to vector<8x64xf32>
    %105 = arith.addf %104, %103 : vector<8x64xf32>
    %106 = arith.divf %104, %105 : vector<8x64xf32>
    %107 = arith.mulf %99, %106 : vector<8x64xf32>
    %108 = arith.mulf %107, %101 : vector<8x64xf32>
    %109 = arith.truncf %108 : vector<8x64xf32> to vector<8x64xbf16>
    %c0_49 = arith.constant 0 : index
    %c0_50 = arith.constant 0 : index
    %110 = vector.load %arg11[%c0_49, %c0_50] : memref<64x32xbf16, #tpu.memory_space<vmem>>, vector<64x32xbf16>
    %cst_51 = arith.constant dense<0.000000e+00> : vector<8x32xf32>
    %111 = tpu.matmul %109, %110, %cst_51 {dimension_numbers = #tpu.dot_dimension_numbers<[1], [0], [0], [1], [0, 0, 1, 1], [], []>} : vector<8x64xbf16>, vector<64x32xbf16>, vector<8x32xf32> -> vector<8x32xf32>
    %112 = arith.addf %111, %83 : vector<8x32xf32>
    %c0_52 = arith.constant 0 : index
    %c0_53 = arith.constant 0 : index
    %c0_54 = arith.constant 0 : index
    %113 = vector.load %arg14[%c0_52, %c0_53, %c0_54] : memref<1x8x32xf32, #tpu.memory_space<vmem>>, vector<1x8x32xf32>
    %114 = vector.shape_cast %113 : vector<1x8x32xf32> to vector<8x32xf32>
    %115 = vector.shape_cast %112 : vector<8x32xf32> to vector<1x8x32xf32>
    tpu.vector_store %arg14[%c0_52, %c0_53, %c0_54], %115 {strides = array<i32>} : memref<1x8x32xf32, #tpu.memory_space<vmem>>, vector<1x8x32xf32>,
    return
  }
  func.func @transform_0(%arg0: i32) -> (i32, i32, i32) {
    %c0_i32 = arith.constant 0 : i32
    %c0_i32_0 = arith.constant 0 : i32
    %c0_i32_1 = arith.constant 0 : i32
    return %arg0, %c0_i32, %c0_i32_0 : i32, i32, i32
  }
  func.func @transform_1(%arg0: i32) -> (i32, i32, i32) {
    %c0_i32 = arith.constant 0 : i32
    %c0_i32_0 = arith.constant 0 : i32
    %c0_i32_1 = arith.constant 0 : i32
    %c0_i32_2 = arith.constant 0 : i32
    return %c0_i32, %c0_i32_0, %c0_i32_1 : i32, i32, i32
  }
  func.func @transform_2(%arg0: i32) -> (i32, i32, i32) {
    %c0_i32 = arith.constant 0 : i32
    %c0_i32_0 = arith.constant 0 : i32
    %c0_i32_1 = arith.constant 0 : i32
    %c0_i32_2 = arith.constant 0 : i32
    return %c0_i32, %c0_i32_0, %c0_i32_1 : i32, i32, i32
  }
  func.func @transform_3(%arg0: i32) -> (i32, i32, i32) {
    %c0_i32 = arith.constant 0 : i32
    %c0_i32_0 = arith.constant 0 : i32
    %c0_i32_1 = arith.constant 0 : i32
    %c0_i32_2 = arith.constant 0 : i32
    return %c0_i32, %c0_i32_0, %c0_i32_1 : i32, i32, i32
  }
  func.func @transform_4(%arg0: i32) -> (i32, i32, i32) {
    %c0_i32 = arith.constant 0 : i32
    %c0_i32_0 = arith.constant 0 : i32
    %c0_i32_1 = arith.constant 0 : i32
    %c0_i32_2 = arith.constant 0 : i32
    return %c0_i32, %c0_i32_0, %c0_i32_1 : i32, i32, i32
  }
  func.func @transform_5(%arg0: i32) -> (i32, i32) {
    %c0_i32 = arith.constant 0 : i32
    %c0_i32_0 = arith.constant 0 : i32
    %c0_i32_1 = arith.constant 0 : i32
    return %c0_i32, %c0_i32_0 : i32, i32
  }
  func.func @transform_6(%arg0: i32) -> (i32, i32) {
    %c0_i32 = arith.constant 0 : i32
    %c0_i32_0 = arith.constant 0 : i32
    %c0_i32_1 = arith.constant 0 : i32
    return %c0_i32, %c0_i32_0 : i32, i32
  }
  func.func @transform_7(%arg0: i32) -> (i32, i32) {
    %c0_i32 = arith.constant 0 : i32
    %c0_i32_0 = arith.constant 0 : i32
    %c0_i32_1 = arith.constant 0 : i32
    return %c0_i32, %c0_i32_0 : i32, i32
  }
  func.func @transform_8(%arg0: i32) -> (i32, i32) {
    %c0_i32 = arith.constant 0 : i32
    %c0_i32_0 = arith.constant 0 : i32
    %c0_i32_1 = arith.constant 0 : i32
    return %c0_i32, %c0_i32_0 : i32, i32
  }
  func.func @transform_9(%arg0: i32) -> (i32, i32) {
    %c0_i32 = arith.constant 0 : i32
    %c0_i32_0 = arith.constant 0 : i32
    %c0_i32_1 = arith.constant 0 : i32
    return %c0_i32, %c0_i32_0 : i32, i32
  }
  func.func @transform_10(%arg0: i32) -> (i32, i32) {
    %c0_i32 = arith.constant 0 : i32
    %c0_i32_0 = arith.constant 0 : i32
    %c0_i32_1 = arith.constant 0 : i32
    return %c0_i32, %c0_i32_0 : i32, i32
  }
  func.func @transform_11(%arg0: i32) -> (i32, i32) {
    %c0_i32 = arith.constant 0 : i32
    %c0_i32_0 = arith.constant 0 : i32
    %c0_i32_1 = arith.constant 0 : i32
    return %c0_i32, %c0_i32_0 : i32, i32
  }
  func.func @transform_12(%arg0: i32) -> (i32, i32) {
    %c0_i32 = arith.constant 0 : i32
    %c0_i32_0 = arith.constant 0 : i32
    %c0_i32_1 = arith.constant 0 : i32
    return %c0_i32, %c0_i32_0 : i32, i32
  }
  func.func @transform_13(%arg0: i32) -> (i32, i32, i32) {
    %c0_i32 = arith.constant 0 : i32
    %c0_i32_0 = arith.constant 0 : i32
    %c0_i32_1 = arith.constant 0 : i32
    return %arg0, %c0_i32, %c0_i32_0 : i32, i32, i32
  }
}

</mosaic_0001>

<llo_original>
// kernel: transformer_block.1
$region0: #{transformer_block.1}
  #allocation0 [shape = 'u32[]', space=smem, size = 0x4, offset = 0x4, fixed_abs, tag = 'smem constant byte address 0x4 - core index']
  #allocation1 [shape = 'u32[72,128]{1,0:T(1,128)}', space=vmem, size = 0x9000, scoped, tag = 'internal scratch']
  %s0 = inlined_call_operand.vmem [shape: f32[2,8,32], index: 0, kind: input, shape index: {}]
  %s1 = inlined_call_operand.vmem [shape: bf16[4,32,8], index: 1, kind: input, shape index: {}]
  %s2 = inlined_call_operand.vmem [shape: bf16[4,32,8], index: 2, kind: input, shape index: {}]
  %s3 = inlined_call_operand.vmem [shape: bf16[4,32,8], index: 3, kind: input, shape index: {}]
  %s4 = inlined_call_operand.vmem [shape: bf16[4,8,32], index: 4, kind: input, shape index: {}]
  %s5 = inlined_call_operand.vmem [shape: f32[1,32], index: 5, kind: input, shape index: {}]
  %s6 = inlined_call_operand.vmem [shape: f32[1,32], index: 6, kind: input, shape index: {}]
  %s7 = inlined_call_operand.vmem [shape: f32[1,32], index: 7, kind: input, shape index: {}]
  %s8 = inlined_call_operand.vmem [shape: bf16[32,64], index: 8, kind: input, shape index: {}]
  %s9 = inlined_call_operand.vmem [shape: bf16[32,64], index: 9, kind: input, shape index: {}]
  %s10 = inlined_call_operand.vmem [shape: bf16[64,32], index: 10, kind: input, shape index: {}]
  %s11 = inlined_call_operand.vmem [shape: f32[8,8], index: 11, kind: input, shape index: {}]
  %s12 = inlined_call_operand.vmem [shape: f32[8,8], index: 12, kind: input, shape index: {}]
  %s13 = inlined_call_operand.hbm [shape: f32[2,8,32], index: 13, kind: output, shape index: {}]
  %s14 = sld [smem:[#allocation0]]
  $region85: #{transformer_block.1} parent=0
    _
  %s16 = ssub.s32 1, %s14
  %s17 = scalar_select 0, %s16, %s14
  $region1: #{transformer_block.1} parent=0
    #allocation2 [shape = 'u8[8192]{0}', space=vmem, size = 0x2000, scoped, tag = 'output window, operand 0']
    #allocation3 [shape = 's32[2]{0}', space=sflag, size = 0x8, scoped, tag = 'scoped memory for transformer_block.1']
    %18 = vsyncpa [#allocation3], 0
    %s19 = scalar_lea.sflag [#allocation3], 1
    %20 = vsyncpa %s19, 0
    loop: start=0, step=1, limit=4
    $region2: #{transformer_block.1} parent=1 // loop_pre_header
      _
    $region3: #{transformer_block.1} parent=1 // loop_header
      %s22 = sphi 0, %s26
      %p23 = scmp.ge.s32.totalorder %s22, 4
      %s32 = sphi 0, %s34
      %s35 = sphi 0, %s32
      %s36 = sphi 0, %s35
      %s52 = sphi 0, %s36
      %s56 = sphi 0, %s56
      %s58 = sphi 0, %s56
      %s59 = sphi 0, %s58
      %s73 = sphi 0, %s59
      %s77 = sphi 0, %s77
      %s79 = sphi 0, %s77
      %s80 = sphi 0, %s79
      %s94 = sphi 0, %s80
      %s98 = sphi 0, %s98
      %s100 = sphi 0, %s98
      %s101 = sphi 0, %s100
      %s115 = sphi 0, %s101
      %s119 = sphi 0, %s119
      %s121 = sphi 0, %s119
      %s122 = sphi 0, %s121
      %s136 = sphi 0, %s122
      %s140 = sphi 0, %s140
      %s142 = sphi 0, %s140
      %s143 = sphi 0, %s142
      %s157 = sphi 0, %s143
      %s161 = sphi 0, %s161
      %s163 = sphi 0, %s161
      %s164 = sphi 0, %s163
      %s178 = sphi 0, %s164
      %s182 = sphi 0, %s182
      %s184 = sphi 0, %s182
      %s185 = sphi 0, %s184
      %s199 = sphi 0, %s185
      %s203 = sphi 0, %s203
      %s205 = sphi 0, %s203
      %s206 = sphi 0, %s205
      %s220 = sphi 0, %s206
      %s224 = sphi 0, %s224
      %s226 = sphi 0, %s224
      %s227 = sphi 0, %s226
      %s241 = sphi 0, %s227
      %s245 = sphi 0, %s245
      %s247 = sphi 0, %s245
      %s248 = sphi 0, %s247
      %s262 = sphi 0, %s248
      %s266 = sphi 0, %s266
      %s268 = sphi 0, %s266
      %s269 = sphi 0, %s268
      %s283 = sphi 0, %s269
      %s287 = sphi 0, %s287
      %s289 = sphi 0, %s287
      %s290 = sphi 0, %s289
      %s304 = sphi 0, %s290
      %s310 = sphi 0, %s312
      %s313 = sphi 0, %s310
      %s314 = sphi 0, %s313
      %s330 = sphi 0, %s314
    $region4: #{transformer_block.1} parent=1 // loop_header_branch
      %25 = sbr.rel (%p23) target = $region8
    $region5: #{transformer_block.1} parent=1 // loop_body
      %s27 = ssub.s32 %s22, 1
      %s28 = ssub.s32 %s22, 2
      %s29 = sadd.s32 %s22, 1
      %s30 = ssub.s32 %s22, %s29
      %p31 = scmp.eq.s32.totalorder %s30, 0
      %s33 = sadd.s32 %s32, 1
      %s34 = scalar_select %p31, %s32, %s33
      %p37 = pneg %p31
      %p38 = scmp.eq.s32.totalorder %s22, 1
      %p39 = por %p37, %p38
      %p40 = scmp.ne.s32.totalorder %s32, %s35
      %p41 = scmp.eq.s32.totalorder %s22, 0
      %p42 = por %p40, %p41
      %p43 = scmp.ne.s32.totalorder %s32, %s35
      %p44 = scmp.eq.s32.totalorder %s27, 1
      %p45 = por %p43, %p44
      %p46 = scmp.ne.s32.totalorder %s35, %s36
      %p47 = scmp.eq.s32.totalorder %s27, 0
      %p48 = por %p46, %p47
      %p49 = scmp.ne.s32.totalorder %s35, %s36
      %p50 = scmp.eq.s32.totalorder %s28, 1
      %p51 = por %p49, %p50
      %p53 = scmp.ne.s32.totalorder %s36, %s52
      %p54 = scmp.eq.s32.totalorder %s28, 0
      %p55 = por %p53, %p54
      %s57 = sadd.s32 %s56, 1
      %p60 = scmp.eq.s32.totalorder %s22, 1
      %p61 = scmp.ne.s32.totalorder %s56, %s58
      %p62 = scmp.eq.s32.totalorder %s22, 0
      %p63 = por %p61, %p62
      %p64 = scmp.ne.s32.totalorder %s56, %s58
      %p65 = scmp.eq.s32.totalorder %s27, 1
      %p66 = por %p64, %p65
      %p67 = scmp.ne.s32.totalorder %s58, %s59
      %p68 = scmp.eq.s32.totalorder %s27, 0
      %p69 = por %p67, %p68
      %p70 = scmp.ne.s32.totalorder %s58, %s59
      %p71 = scmp.eq.s32.totalorder %s28, 1
      %p72 = por %p70, %p71
      %p74 = scmp.ne.s32.totalorder %s59, %s73
      %p75 = scmp.eq.s32.totalorder %s28, 0
      %p76 = por %p74, %p75
      %s78 = sadd.s32 %s77, 1
      %p81 = scmp.eq.s32.totalorder %s22, 1
      %p82 = scmp.ne.s32.totalorder %s77, %s79
      %p83 = scmp.eq.s32.totalorder %s22, 0
      %p84 = por %p82, %p83
      %p85 = scmp.ne.s32.totalorder %s77, %s79
      %p86 = scmp.eq.s32.totalorder %s27, 1
      %p87 = por %p85, %p86
      %p88 = scmp.ne.s32.totalorder %s79, %s80
      %p89 = scmp.eq.s32.totalorder %s27, 0
      %p90 = por %p88, %p89
      %p91 = scmp.ne.s32.totalorder %s79, %s80
      %p92 = scmp.eq.s32.totalorder %s28, 1
      %p93 = por %p91, %p92
      %p95 = scmp.ne.s32.totalorder %s80, %s94
      %p96 = scmp.eq.s32.totalorder %s28, 0
      %p97 = por %p95, %p96
      %s99 = sadd.s32 %s98, 1
      %p102 = scmp.eq.s32.totalorder %s22, 1
      %p103 = scmp.ne.s32.totalorder %s98, %s100
      %p104 = scmp.eq.s32.totalorder %s22, 0
      %p105 = por %p103, %p104
      %p106 = scmp.ne.s32.totalorder %s98, %s100
      %p107 = scmp.eq.s32.totalorder %s27, 1
      %p108 = por %p106, %p107
      %p109 = scmp.ne.s32.totalorder %s100, %s101
      %p110 = scmp.eq.s32.totalorder %s27, 0
      %p111 = por %p109, %p110
      %p112 = scmp.ne.s32.totalorder %s100, %s101
      %p113 = scmp.eq.s32.totalorder %s28, 1
      %p114 = por %p112, %p113
      %p116 = scmp.ne.s32.totalorder %s101, %s115
      %p117 = scmp.eq.s32.totalorder %s28, 0
      %p118 = por %p116, %p117
      %s120 = sadd.s32 %s119, 1
      %p123 = scmp.eq.s32.totalorder %s22, 1
      %p124 = scmp.ne.s32.totalorder %s119, %s121
      %p125 = scmp.eq.s32.totalorder %s22, 0
      %p126 = por %p124, %p125
      %p127 = scmp.ne.s32.totalorder %s119, %s121
      %p128 = scmp.eq.s32.totalorder %s27, 1
      %p129 = por %p127, %p128
      %p130 = scmp.ne.s32.totalorder %s121, %s122
      %p131 = scmp.eq.s32.totalorder %s27, 0
      %p132 = por %p130, %p131
      %p133 = scmp.ne.s32.totalorder %s121, %s122
      %p134 = scmp.eq.s32.totalorder %s28, 1
      %p135 = por %p133, %p134
      %p137 = scmp.ne.s32.totalorder %s122, %s136
      %p138 = scmp.eq.s32.totalorder %s28, 0
      %p139 = por %p137, %p138
      %s141 = sadd.s32 %s140, 1
      %p144 = scmp.eq.s32.totalorder %s22, 1
      %p145 = scmp.ne.s32.totalorder %s140, %s142
      %p146 = scmp.eq.s32.totalorder %s22, 0
      %p147 = por %p145, %p146
      %p148 = scmp.ne.s32.totalorder %s140, %s142
      %p149 = scmp.eq.s32.totalorder %s27, 1
      %p150 = por %p148, %p149
      %p151 = scmp.ne.s32.totalorder %s142, %s143
      %p152 = scmp.eq.s32.totalorder %s27, 0
      %p153 = por %p151, %p152
      %p154 = scmp.ne.s32.totalorder %s142, %s143
      %p155 = scmp.eq.s32.totalorder %s28, 1
      %p156 = por %p154, %p155
      %p158 = scmp.ne.s32.totalorder %s143, %s157
      %p159 = scmp.eq.s32.totalorder %s28, 0
      %p160 = por %p158, %p159
      %s162 = sadd.s32 %s161, 1
      %p165 = scmp.eq.s32.totalorder %s22, 1
      %p166 = scmp.ne.s32.totalorder %s161, %s163
      %p167 = scmp.eq.s32.totalorder %s22, 0
      %p168 = por %p166, %p167
      %p169 = scmp.ne.s32.totalorder %s161, %s163
      %p170 = scmp.eq.s32.totalorder %s27, 1
      %p171 = por %p169, %p170
      %p172 = scmp.ne.s32.totalorder %s163, %s164
      %p173 = scmp.eq.s32.totalorder %s27, 0
      %p174 = por %p172, %p173
      %p175 = scmp.ne.s32.totalorder %s163, %s164
      %p176 = scmp.eq.s32.totalorder %s28, 1
      %p177 = por %p175, %p176
      %p179 = scmp.ne.s32.totalorder %s164, %s178
      %p180 = scmp.eq.s32.totalorder %s28, 0
      %p181 = por %p179, %p180
      %s183 = sadd.s32 %s182, 1
      %p186 = scmp.eq.s32.totalorder %s22, 1
      %p187 = scmp.ne.s32.totalorder %s182, %s184
      %p188 = scmp.eq.s32.totalorder %s22, 0
      %p189 = por %p187, %p188
      %p190 = scmp.ne.s32.totalorder %s182, %s184
      %p191 = scmp.eq.s32.totalorder %s27, 1
      %p192 = por %p190, %p191
      %p193 = scmp.ne.s32.totalorder %s184, %s185
      %p194 = scmp.eq.s32.totalorder %s27, 0
      %p195 = por %p193, %p194
      %p196 = scmp.ne.s32.totalorder %s184, %s185
      %p197 = scmp.eq.s32.totalorder %s28, 1
      %p198 = por %p196, %p197
      %p200 = scmp.ne.s32.totalorder %s185, %s199
      %p201 = scmp.eq.s32.totalorder %s28, 0
      %p202 = por %p200, %p201
      %s204 = sadd.s32 %s203, 1
      %p207 = scmp.eq.s32.totalorder %s22, 1
      %p208 = scmp.ne.s32.totalorder %s203, %s205
      %p209 = scmp.eq.s32.totalorder %s22, 0
      %p210 = por %p208, %p209
      %p211 = scmp.ne.s32.totalorder %s203, %s205
      %p212 = scmp.eq.s32.totalorder %s27, 1
      %p213 = por %p211, %p212
      %p214 = scmp.ne.s32.totalorder %s205, %s206
      %p215 = scmp.eq.s32.totalorder %s27, 0
      %p216 = por %p214, %p215
      %p217 = scmp.ne.s32.totalorder %s205, %s206
      %p218 = scmp.eq.s32.totalorder %s28, 1
      %p219 = por %p217, %p218
      %p221 = scmp.ne.s32.totalorder %s206, %s220
      %p222 = scmp.eq.s32.totalorder %s28, 0
      %p223 = por %p221, %p222
      %s225 = sadd.s32 %s224, 1
      %p228 = scmp.eq.s32.totalorder %s22, 1
      %p229 = scmp.ne.s32.totalorder %s224, %s226
      %p230 = scmp.eq.s32.totalorder %s22, 0
      %p231 = por %p229, %p230
      %p232 = scmp.ne.s32.totalorder %s224, %s226
      %p233 = scmp.eq.s32.totalorder %s27, 1
      %p234 = por %p232, %p233
      %p235 = scmp.ne.s32.totalorder %s226, %s227
      %p236 = scmp.eq.s32.totalorder %s27, 0
      %p237 = por %p235, %p236
      %p238 = scmp.ne.s32.totalorder %s226, %s227
      %p239 = scmp.eq.s32.totalorder %s28, 1
      %p240 = por %p238, %p239
      %p242 = scmp.ne.s32.totalorder %s227, %s241
      %p243 = scmp.eq.s32.totalorder %s28, 0
      %p244 = por %p242, %p243
      %s246 = sadd.s32 %s245, 1
      %p249 = scmp.eq.s32.totalorder %s22, 1
      %p250 = scmp.ne.s32.totalorder %s245, %s247
      %p251 = scmp.eq.s32.totalorder %s22, 0
      %p252 = por %p250, %p251
      %p253 = scmp.ne.s32.totalorder %s245, %s247
      %p254 = scmp.eq.s32.totalorder %s27, 1
      %p255 = por %p253, %p254
      %p256 = scmp.ne.s32.totalorder %s247, %s248
      %p257 = scmp.eq.s32.totalorder %s27, 0
      %p258 = por %p256, %p257
      %p259 = scmp.ne.s32.totalorder %s247, %s248
      %p260 = scmp.eq.s32.totalorder %s28, 1
      %p261 = por %p259, %p260
      %p263 = scmp.ne.s32.totalorder %s248, %s262
      %p264 = scmp.eq.s32.totalorder %s28, 0
      %p265 = por %p263, %p264
      %s267 = sadd.s32 %s266, 1
      %p270 = scmp.eq.s32.totalorder %s22, 1
      %p271 = scmp.ne.s32.totalorder %s266, %s268
      %p272 = scmp.eq.s32.totalorder %s22, 0
      %p273 = por %p271, %p272
      %p274 = scmp.ne.s32.totalorder %s266, %s268
      %p275 = scmp.eq.s32.totalorder %s27, 1
      %p276 = por %p274, %p275
      %p277 = scmp.ne.s32.totalorder %s268, %s269
      %p278 = scmp.eq.s32.totalorder %s27, 0
      %p279 = por %p277, %p278
      %p280 = scmp.ne.s32.totalorder %s268, %s269
      %p281 = scmp.eq.s32.totalorder %s28, 1
      %p282 = por %p280, %p281
      %p284 = scmp.ne.s32.totalorder %s269, %s283
      %p285 = scmp.eq.s32.totalorder %s28, 0
      %p286 = por %p284, %p285
      %s288 = sadd.s32 %s287, 1
      %p291 = scmp.eq.s32.totalorder %s22, 1
      %p292 = scmp.ne.s32.totalorder %s287, %s289
      %p293 = scmp.eq.s32.totalorder %s22, 0
      %p294 = por %p292, %p293
      %p295 = scmp.ne.s32.totalorder %s287, %s289
      %p296 = scmp.eq.s32.totalorder %s27, 1
      %p297 = por %p295, %p296
      %p298 = scmp.ne.s32.totalorder %s289, %s290
      %p299 = scmp.eq.s32.totalorder %s27, 0
      %p300 = por %p298, %p299
      %p301 = scmp.ne.s32.totalorder %s289, %s290
      %p302 = scmp.eq.s32.totalorder %s28, 1
      %p303 = por %p301, %p302
      %p305 = scmp.ne.s32.totalorder %s290, %s304
      %p306 = scmp.eq.s32.totalorder %s28, 0
      %p307 = por %p305, %p306
      %s308 = ssub.s32 %s22, %s29
      %p309 = scmp.eq.s32.totalorder %s308, 0
      %s311 = sadd.s32 %s310, 1
      %s312 = scalar_select %p309, %s310, %s311
      %p315 = pneg %p309
      %p316 = scmp.eq.s32.totalorder %s22, 1
      %p317 = por %p315, %p316
      %p318 = scmp.ne.s32.totalorder %s310, %s313
      %p319 = scmp.eq.s32.totalorder %s22, 0
      %p320 = por %p318, %p319
      %p321 = scmp.ne.s32.totalorder %s310, %s313
      %p322 = scmp.eq.s32.totalorder %s27, 1
      %p323 = por %p321, %p322
      %p324 = scmp.ne.s32.totalorder %s313, %s314
      %p325 = scmp.eq.s32.totalorder %s27, 0
      %p326 = por %p324, %p325
      %p327 = scmp.ne.s32.totalorder %s313, %s314
      %p328 = scmp.eq.s32.totalorder %s28, 1
      %p329 = por %p327, %p328
      %p331 = scmp.ne.s32.totalorder %s314, %s330
      %p332 = scmp.eq.s32.totalorder %s28, 0
      %p333 = por %p331, %p332
      %p334 = scmp.le.s32.totalorder 1, %s22
      %p335 = scmp.lt.s32.totalorder %s22, 3
      %p336 = pnand %p334, %p335
      %p337 = pneg %p336
      // Predicated region
      $region9: #{transformer_block.1} parent=5 // pred_check
        _
      $region10: #{transformer_block.1} parent=5 // pred_check_branch
        %339 = sbr.rel (%p336) target = $region12
      $region11: #{transformer_block.1} parent=5 // pred_region
        %s340 = ssub.s32 %s22, 1
        // Predicated region
        $region13: #{transformer_block.1} parent=11 // pred_check
          %p341 = pneg %p69
        $region14: #{transformer_block.1} parent=11 // pred_check_branch
          %343 = sbr.rel (%p341) target = $region16
        $region15: #{transformer_block.1} parent=11 // pred_region
          _
        $region16: #{transformer_block.1} parent=11 // pred_fallthru
          _
        // Predicated region
        $region17: #{transformer_block.1} parent=11 // pred_check
          %p344 = pneg %p90
        $region18: #{transformer_block.1} parent=11 // pred_check_branch
          %346 = sbr.rel (%p344) target = $region20
        $region19: #{transformer_block.1} parent=11 // pred_region
          _
        $region20: #{transformer_block.1} parent=11 // pred_fallthru
          _
        // Predicated region
        $region21: #{transformer_block.1} parent=11 // pred_check
          %p347 = pneg %p111
        $region22: #{transformer_block.1} parent=11 // pred_check_branch
          %349 = sbr.rel (%p347) target = $region24
        $region23: #{transformer_block.1} parent=11 // pred_region
          _
        $region24: #{transformer_block.1} parent=11 // pred_fallthru
          _
        // Predicated region
        $region25: #{transformer_block.1} parent=11 // pred_check
          %p350 = pneg %p132
        $region26: #{transformer_block.1} parent=11 // pred_check_branch
          %352 = sbr.rel (%p350) target = $region28
        $region27: #{transformer_block.1} parent=11 // pred_region
          _
        $region28: #{transformer_block.1} parent=11 // pred_fallthru
          _
        // Predicated region
        $region29: #{transformer_block.1} parent=11 // pred_check
          %p353 = pneg %p153
        $region30: #{transformer_block.1} parent=11 // pred_check_branch
          %355 = sbr.rel (%p353) target = $region32
        $region31: #{transformer_block.1} parent=11 // pred_region
          _
        $region32: #{transformer_block.1} parent=11 // pred_fallthru
          _
        // Predicated region
        $region33: #{transformer_block.1} parent=11 // pred_check
          %p356 = pneg %p174
        $region34: #{transformer_block.1} parent=11 // pred_check_branch
          %358 = sbr.rel (%p356) target = $region36
        $region35: #{transformer_block.1} parent=11 // pred_region
          _
        $region36: #{transformer_block.1} parent=11 // pred_fallthru
          _
        // Predicated region
        $region37: #{transformer_block.1} parent=11 // pred_check
          %p359 = pneg %p195
        $region38: #{transformer_block.1} parent=11 // pred_check_branch
          %361 = sbr.rel (%p359) target = $region40
        $region39: #{transformer_block.1} parent=11 // pred_region
          _
        $region40: #{transformer_block.1} parent=11 // pred_fallthru
          _
        // Predicated region
        $region41: #{transformer_block.1} parent=11 // pred_check
          %p362 = pneg %p216
        $region42: #{transformer_block.1} parent=11 // pred_check_branch
          %364 = sbr.rel (%p362) target = $region44
        $region43: #{transformer_block.1} parent=11 // pred_region
          _
        $region44: #{transformer_block.1} parent=11 // pred_fallthru
          _
        // Predicated region
        $region45: #{transformer_block.1} parent=11 // pred_check
          %p365 = pneg %p237
        $region46: #{transformer_block.1} parent=11 // pred_check_branch
          %367 = sbr.rel (%p365) target = $region48
        $region47: #{transformer_block.1} parent=11 // pred_region
          _
        $region48: #{transformer_block.1} parent=11 // pred_fallthru
          _
        // Predicated region
        $region49: #{transformer_block.1} parent=11 // pred_check
          %p368 = pneg %p258
        $region50: #{transformer_block.1} parent=11 // pred_check_branch
          %370 = sbr.rel (%p368) target = $region52
        $region51: #{transformer_block.1} parent=11 // pred_region
          _
        $region52: #{transformer_block.1} parent=11 // pred_fallthru
          _
        // Predicated region
        $region53: #{transformer_block.1} parent=11 // pred_check
          %p371 = pneg %p279
        $region54: #{transformer_block.1} parent=11 // pred_check_branch
          %373 = sbr.rel (%p371) target = $region56
        $region55: #{transformer_block.1} parent=11 // pred_region
          _
        $region56: #{transformer_block.1} parent=11 // pred_fallthru
          _
        // Predicated region
        $region57: #{transformer_block.1} parent=11 // pred_check
          %p374 = pneg %p300
        $region58: #{transformer_block.1} parent=11 // pred_check_branch
          %376 = sbr.rel (%p374) target = $region60
        $region59: #{transformer_block.1} parent=11 // pred_region
          _
        $region60: #{transformer_block.1} parent=11 // pred_fallthru
          _
      $region12: #{transformer_block.1} parent=5 // pred_fallthru
        _
      %p377 = scmp.lt.s32.totalorder %s22, 2
      // Predicated region
      $region61: #{transformer_block.1} parent=5 // pred_check
        %p378 = pneg %p377
      $region62: #{transformer_block.1} parent=5 // pred_check_branch
        %380 = sbr.rel (%p378) target = $region64
      $region63: #{transformer_block.1} parent=5 // pred_region
        // Predicated region
        $region65: #{transformer_block.1} parent=63 // pred_check
          %p381 = pneg %p42
        $region66: #{transformer_block.1} parent=63 // pred_check_branch
          %383 = sbr.rel (%p381) target = $region68
        $region67: #{transformer_block.1} parent=63 // pred_region
          %p384 = scmp.lt.s32.totalorder %s22, 1
          %s385 = scalar_select %p384, %s22, 1
          %s386 = smul.addr %s385, 8
          %s387 = scalar_lea.vmem %s0, %s386
        $region68: #{transformer_block.1} parent=63 // pred_fallthru
          _
      $region64: #{transformer_block.1} parent=5 // pred_fallthru
        _
      %p388 = scmp.le.s32.totalorder 1, %s22
      %p389 = scmp.lt.s32.totalorder %s22, 3
      %p390 = pnand %p388, %p389
      %p391 = pneg %p390
      // Predicated region
      $region69: #{transformer_block.1} parent=5 // pred_check
        _
      $region70: #{transformer_block.1} parent=5 // pred_check_branch
        %393 = sbr.rel (%p390) target = $region72
      $region71: #{transformer_block.1} parent=5 // pred_region
        %s394 = ssub.s32 %s22, 1
        %p395 = scmp.lt.s32.totalorder %s27, 1
        %s396 = scalar_select %p395, %s27, 1
        %s397 = smul.addr %s396, 8
        %s398 = scalar_lea.vmem %s0, %s397
        %p399 = pneg %p48
        %p400 = pneg %p45
        %p401 = pneg %p69
        %p402 = pneg %p66
        %p403 = pneg %p90
        %p404 = pneg %p87
        %p405 = pneg %p111
        %p406 = pneg %p108
        %p407 = pneg %p132
        %p408 = pneg %p129
        %p409 = pneg %p153
        %p410 = pneg %p150
        %p411 = pneg %p174
        %p412 = pneg %p171
        %p413 = pneg %p195
        %p414 = pneg %p192
        %p415 = pneg %p216
        %p416 = pneg %p213
        %p417 = pneg %p237
        %p418 = pneg %p234
        %p419 = pneg %p258
        %p420 = pneg %p255
        %p421 = pneg %p279
        %p422 = pneg %p276
        %p423 = pneg %p300
        %p424 = pneg %p297
        %p425 = pneg %p326
        %p426 = pneg %p323
        %s427 = sand.u32 %s313, 1
        %s428 = scalar_lea.sflag [#allocation3], %s427
        %s429 = sand.u32 %s313, 1
        %s430 = smul.addr %s429, 8
        %s431 = scalar_lea.vmem [#allocation2], %s430
        %p432 = scmp.lt.s32.totalorder %s27, 1
        %s433 = scalar_select %p432, %s27, 1
        %s434 = smul.addr %s433, 8
        %s435 = scalar_lea.vmem %s0, %s434
        %v437 = vld [vmem:[%s435] sm:$0xff]
        %v438 = vmul.f32 %v437, %v437
        %vm439 = vcmask 261120
        %v440 = vsel %vm439, %v438, 0.0
        %441 = vadd.xlane.f32.xlu0 %v440
        %v442 = vpop.xlane.xlu0 %441
        %v443 = vrcp.pop 32.0
        %v444 = vmul.f32 32.0, %v443
        %v445 = vsub.f32 1.0, %v444
        %v446 = vmul.f32 %v443, %v445
        %v447 = vadd.f32 %v443, %v446
        %vm448 = vweird.f32 %v443
        %v449 = vsel %vm448, %v443, %v447
        %v450 = vmul.f32 %v442, %v449
        %v451 = vadd.f32 %v450, 1e-05
        %v452 = vrsqrt.pop %v451
        %v453 = vmul.f32 %v452, %v451
        %v454 = vmul.f32 %v453, %v452
        %v455 = vmul.f32 0.5, %v454
        %v456 = vsub.f32 1.5, %v455
        %v457 = vmul.f32 %v452, %v456
        %vm458 = vweird.f32 %v451
        %vm459 = vweird.f32 %v452
        %vm460 = vmor %vm458, %vm459
        %v461 = vsel %vm460, %v452, %v457
        %v462 = vmul.f32 %v437, %v461
        %v463 = vld [vmem:[%s6] sm:$0x1]
        %v465 = vperm.slane %v463, 0
        %v467 = vmul.f32 %v462, %v465
        %v468 = vpack.c.bf16 %v467, %v467
        %v469 = vld [vmem:[%s1] sm:$0xf]
        %v470 = vld [vmem:[%s1 + $0x4] sm:$0xf]
        %v471 = vld [vmem:[%s1 + $0x8] sm:$0xf]
        %v472 = vld [vmem:[%s1 + $0xc] sm:$0xf]
        %v473 = vld [vmem:[%s1 + $0x10] sm:$0xf]
        %v474 = vld [vmem:[%s1 + $0x14] sm:$0xf]
        %v475 = vld [vmem:[%s1 + $0x18] sm:$0xf]
        %v476 = vld [vmem:[%s1 + $0x1c] sm:$0xf]
        %v477 = vld [vmem:[%s1 + $0x20] sm:$0xf]
        %v478 = vld [vmem:[%s1 + $0x24] sm:$0xf]
        %v479 = vld [vmem:[%s1 + $0x28] sm:$0xf]
        %v480 = vld [vmem:[%s1 + $0x2c] sm:$0xf]
        %v481 = vld [vmem:[%s1 + $0x30] sm:$0xf]
        %v482 = vld [vmem:[%s1 + $0x34] sm:$0xf]
        %v483 = vld [vmem:[%s1 + $0x38] sm:$0xf]
        %v484 = vld [vmem:[%s1 + $0x3c] sm:$0xf]
        %v489 = vunpack.c.l.b16 %v469
        %v490 = vunpack.c.l.b16 %v470
        %v491 = vunpack.c.l.b16 %v471
        %v492 = vunpack.c.l.b16 %v472
        %v493 = vpack.c.b16 %v490, %v489
        %v494 = vpack.c.b16 %v492, %v491
        %v498 = vsel %vm439, %v468, 0
        %500 = vmatpush.bf16.msra.mxu0 0
        %501 = vmatpush.bf16.msra.mxu0 0
        %502 = vmatpush.bf16.msra.mxu0 0
        %503 = vmatpush.bf16.msra.mxu0 0
        %504 = vmatpush.bf16.msra.mxu0 0
        %505 = vmatpush.bf16.msra.mxu0 0
        %506 = vmatpush.bf16.msra.mxu0 %v494
        %507 = vmatpush.bf16.msra.mxu0 %v493
        %508 = vmatmul.bf16.gmra.mxu0 %v498
        %v509 = vpop.f32.mrf.mxu0
        %v510 = vadd.f32 0.0, %v509
        %v511 = vpop.f32.mrf.mxu0
        %512 = vdwg.mxu0
        %v517 = vunpack.c.l.b16 %v473
        %v518 = vunpack.c.l.b16 %v474
        %v519 = vunpack.c.l.b16 %v475
        %v520 = vunpack.c.l.b16 %v476
        %v521 = vpack.c.b16 %v518, %v517
        %v522 = vpack.c.b16 %v520, %v519
        %525 = vmatpush.bf16.msra.mxu0 0
        %526 = vmatpush.bf16.msra.mxu0 0
        %527 = vmatpush.bf16.msra.mxu0 0
        %528 = vmatpush.bf16.msra.mxu0 0
        %529 = vmatpush.bf16.msra.mxu0 0
        %530 = vmatpush.bf16.msra.mxu0 0
        %531 = vmatpush.bf16.msra.mxu0 %v522
        %532 = vmatpush.bf16.msra.mxu0 %v521
        %533 = vmatmul.bf16.gmra.mxu0 %v498
        %v534 = vpop.f32.mrf.mxu0
        %v535 = vadd.f32 0.0, %v534
        %v536 = vpop.f32.mrf.mxu0
        %537 = vdwg.mxu0
        %v542 = vunpack.c.l.b16 %v477
        %v543 = vunpack.c.l.b16 %v478
        %v544 = vunpack.c.l.b16 %v479
        %v545 = vunpack.c.l.b16 %v480
        %v546 = vpack.c.b16 %v543, %v542
        %v547 = vpack.c.b16 %v545, %v544
        %550 = vmatpush.bf16.msra.mxu0 0
        %551 = vmatpush.bf16.msra.mxu0 0
        %552 = vmatpush.bf16.msra.mxu0 0
        %553 = vmatpush.bf16.msra.mxu0 0
        %554 = vmatpush.bf16.msra.mxu0 0
        %555 = vmatpush.bf16.msra.mxu0 0
        %556 = vmatpush.bf16.msra.mxu0 %v547
        %557 = vmatpush.bf16.msra.mxu0 %v546
        %558 = vmatmul.bf16.gmra.mxu0 %v498
        %v559 = vpop.f32.mrf.mxu0
        %v560 = vadd.f32 0.0, %v559
        %v561 = vpop.f32.mrf.mxu0
        %562 = vdwg.mxu0
        %v567 = vunpack.c.l.b16 %v481
        %v568 = vunpack.c.l.b16 %v482
        %v569 = vunpack.c.l.b16 %v483
        %v570 = vunpack.c.l.b16 %v484
        %v571 = vpack.c.b16 %v568, %v567
        %v572 = vpack.c.b16 %v570, %v569
        %575 = vmatpush.bf16.msra.mxu0 0
        %576 = vmatpush.bf16.msra.mxu0 0
        %577 = vmatpush.bf16.msra.mxu0 0
        %578 = vmatpush.bf16.msra.mxu0 0
        %579 = vmatpush.bf16.msra.mxu0 0
        %580 = vmatpush.bf16.msra.mxu0 0
        %581 = vmatpush.bf16.msra.mxu0 %v572
        %582 = vmatpush.bf16.msra.mxu0 %v571
        %583 = vmatmul.bf16.gmra.mxu0 %v498
        %v584 = vpop.f32.mrf.mxu0
        %v585 = vadd.f32 0.0, %v584
        %v586 = vpop.f32.mrf.mxu0
        %587 = vdwg.mxu0
        %v588 = vld [vmem:[%s2] sm:$0xf]
        %v589 = vld [vmem:[%s2 + $0x4] sm:$0xf]
        %v590 = vld [vmem:[%s2 + $0x8] sm:$0xf]
        %v591 = vld [vmem:[%s2 + $0xc] sm:$0xf]
        %v592 = vld [vmem:[%s2 + $0x10] sm:$0xf]
        %v593 = vld [vmem:[%s2 + $0x14] sm:$0xf]
        %v594 = vld [vmem:[%s2 + $0x18] sm:$0xf]
        %v595 = vld [vmem:[%s2 + $0x1c] sm:$0xf]
        %v596 = vld [vmem:[%s2 + $0x20] sm:$0xf]
        %v597 = vld [vmem:[%s2 + $0x24] sm:$0xf]
        %v598 = vld [vmem:[%s2 + $0x28] sm:$0xf]
        %v599 = vld [vmem:[%s2 + $0x2c] sm:$0xf]
        %v600 = vld [vmem:[%s2 + $0x30] sm:$0xf]
        %v601 = vld [vmem:[%s2 + $0x34] sm:$0xf]
        %v602 = vld [vmem:[%s2 + $0x38] sm:$0xf]
        %v603 = vld [vmem:[%s2 + $0x3c] sm:$0xf]
        %v608 = vunpack.c.l.b16 %v588
        %v609 = vunpack.c.l.b16 %v589
        %v610 = vunpack.c.l.b16 %v590
        %v611 = vunpack.c.l.b16 %v591
        %v612 = vpack.c.b16 %v609, %v608
        %v613 = vpack.c.b16 %v611, %v610
        %616 = vmatpush.bf16.msra.mxu0 0
        %617 = vmatpush.bf16.msra.mxu0 0
        %618 = vmatpush.bf16.msra.mxu0 0
        %619 = vmatpush.bf16.msra.mxu0 0
        %620 = vmatpush.bf16.msra.mxu0 0
        %621 = vmatpush.bf16.msra.mxu0 0
        %622 = vmatpush.bf16.msra.mxu0 %v613
        %623 = vmatpush.bf16.msra.mxu0 %v612
        %624 = vmatmul.bf16.gmra.mxu0 %v498
        %v625 = vpop.f32.mrf.mxu0
        %v626 = vadd.f32 0.0, %v625
        %v627 = vpop.f32.mrf.mxu0
        %628 = vdwg.mxu0
        %v633 = vunpack.c.l.b16 %v592
        %v634 = vunpack.c.l.b16 %v593
        %v635 = vunpack.c.l.b16 %v594
        %v636 = vunpack.c.l.b16 %v595
        %v637 = vpack.c.b16 %v634, %v633
        %v638 = vpack.c.b16 %v636, %v635
        %641 = vmatpush.bf16.msra.mxu0 0
        %642 = vmatpush.bf16.msra.mxu0 0
        %643 = vmatpush.bf16.msra.mxu0 0
        %644 = vmatpush.bf16.msra.mxu0 0
        %645 = vmatpush.bf16.msra.mxu0 0
        %646 = vmatpush.bf16.msra.mxu0 0
        %647 = vmatpush.bf16.msra.mxu0 %v638
        %648 = vmatpush.bf16.msra.mxu0 %v637
        %649 = vmatmul.bf16.gmra.mxu0 %v498
        %v650 = vpop.f32.mrf.mxu0
        %v651 = vadd.f32 0.0, %v650
        %v652 = vpop.f32.mrf.mxu0
        %653 = vdwg.mxu0
        %v658 = vunpack.c.l.b16 %v596
        %v659 = vunpack.c.l.b16 %v597
        %v660 = vunpack.c.l.b16 %v598
        %v661 = vunpack.c.l.b16 %v599
        %v662 = vpack.c.b16 %v659, %v658
        %v663 = vpack.c.b16 %v661, %v660
        %666 = vmatpush.bf16.msra.mxu0 0
        %667 = vmatpush.bf16.msra.mxu0 0
        %668 = vmatpush.bf16.msra.mxu0 0
        %669 = vmatpush.bf16.msra.mxu0 0
        %670 = vmatpush.bf16.msra.mxu0 0
        %671 = vmatpush.bf16.msra.mxu0 0
        %672 = vmatpush.bf16.msra.mxu0 %v663
        %673 = vmatpush.bf16.msra.mxu0 %v662
        %674 = vmatmul.bf16.gmra.mxu0 %v498
        %v675 = vpop.f32.mrf.mxu0
        %v676 = vadd.f32 0.0, %v675
        %v677 = vpop.f32.mrf.mxu0
        %678 = vdwg.mxu0
        %v683 = vunpack.c.l.b16 %v600
        %v684 = vunpack.c.l.b16 %v601
        %v685 = vunpack.c.l.b16 %v602
        %v686 = vunpack.c.l.b16 %v603
        %v687 = vpack.c.b16 %v684, %v683
        %v688 = vpack.c.b16 %v686, %v685
        %691 = vmatpush.bf16.msra.mxu0 0
        %692 = vmatpush.bf16.msra.mxu0 0
        %693 = vmatpush.bf16.msra.mxu0 0
        %694 = vmatpush.bf16.msra.mxu0 0
        %695 = vmatpush.bf16.msra.mxu0 0
        %696 = vmatpush.bf16.msra.mxu0 0
        %697 = vmatpush.bf16.msra.mxu0 %v688
        %698 = vmatpush.bf16.msra.mxu0 %v687
        %699 = vmatmul.bf16.gmra.mxu0 %v498
        %v700 = vpop.f32.mrf.mxu0
        %v701 = vadd.f32 0.0, %v700
        %v702 = vpop.f32.mrf.mxu0
        %703 = vdwg.mxu0
        %v704 = vld [vmem:[%s3] sm:$0xf]
        %v705 = vld [vmem:[%s3 + $0x4] sm:$0xf]
        %v706 = vld [vmem:[%s3 + $0x8] sm:$0xf]
        %v707 = vld [vmem:[%s3 + $0xc] sm:$0xf]
        %v708 = vld [vmem:[%s3 + $0x10] sm:$0xf]
        %v709 = vld [vmem:[%s3 + $0x14] sm:$0xf]
        %v710 = vld [vmem:[%s3 + $0x18] sm:$0xf]
        %v711 = vld [vmem:[%s3 + $0x1c] sm:$0xf]
        %v712 = vld [vmem:[%s3 + $0x20] sm:$0xf]
        %v713 = vld [vmem:[%s3 + $0x24] sm:$0xf]
        %v714 = vld [vmem:[%s3 + $0x28] sm:$0xf]
        %v715 = vld [vmem:[%s3 + $0x2c] sm:$0xf]
        %v716 = vld [vmem:[%s3 + $0x30] sm:$0xf]
        %v717 = vld [vmem:[%s3 + $0x34] sm:$0xf]
        %v718 = vld [vmem:[%s3 + $0x38] sm:$0xf]
        %v719 = vld [vmem:[%s3 + $0x3c] sm:$0xf]
        %v724 = vunpack.c.l.b16 %v704
        %v725 = vunpack.c.l.b16 %v705
        %v726 = vunpack.c.l.b16 %v706
        %v727 = vunpack.c.l.b16 %v707
        %v728 = vpack.c.b16 %v725, %v724
        %v729 = vpack.c.b16 %v727, %v726
        %732 = vmatpush.bf16.msra.mxu0 0
        %733 = vmatpush.bf16.msra.mxu0 0
        %734 = vmatpush.bf16.msra.mxu0 0
        %735 = vmatpush.bf16.msra.mxu0 0
        %736 = vmatpush.bf16.msra.mxu0 0
        %737 = vmatpush.bf16.msra.mxu0 0
        %738 = vmatpush.bf16.msra.mxu0 %v729
        %739 = vmatpush.bf16.msra.mxu0 %v728
        %740 = vmatmul.bf16.gmra.mxu0 %v498
        %v741 = vpop.f32.mrf.mxu0
        %v742 = vadd.f32 0.0, %v741
        %v743 = vpop.f32.mrf.mxu0
        %744 = vdwg.mxu0
        %v749 = vunpack.c.l.b16 %v708
        %v750 = vunpack.c.l.b16 %v709
        %v751 = vunpack.c.l.b16 %v710
        %v752 = vunpack.c.l.b16 %v711
        %v753 = vpack.c.b16 %v750, %v749
        %v754 = vpack.c.b16 %v752, %v751
        %757 = vmatpush.bf16.msra.mxu0 0
        %758 = vmatpush.bf16.msra.mxu0 0
        %759 = vmatpush.bf16.msra.mxu0 0
        %760 = vmatpush.bf16.msra.mxu0 0
        %761 = vmatpush.bf16.msra.mxu0 0
        %762 = vmatpush.bf16.msra.mxu0 0
        %763 = vmatpush.bf16.msra.mxu0 %v754
        %764 = vmatpush.bf16.msra.mxu0 %v753
        %765 = vmatmul.bf16.gmra.mxu0 %v498
        %v766 = vpop.f32.mrf.mxu0
        %v767 = vadd.f32 0.0, %v766
        %v768 = vpop.f32.mrf.mxu0
        %769 = vdwg.mxu0
        %v774 = vunpack.c.l.b16 %v712
        %v775 = vunpack.c.l.b16 %v713
        %v776 = vunpack.c.l.b16 %v714
        %v777 = vunpack.c.l.b16 %v715
        %v778 = vpack.c.b16 %v775, %v774
        %v779 = vpack.c.b16 %v777, %v776
        %782 = vmatpush.bf16.msra.mxu0 0
        %783 = vmatpush.bf16.msra.mxu0 0
        %784 = vmatpush.bf16.msra.mxu0 0
        %785 = vmatpush.bf16.msra.mxu0 0
        %786 = vmatpush.bf16.msra.mxu0 0
        %787 = vmatpush.bf16.msra.mxu0 0
        %788 = vmatpush.bf16.msra.mxu0 %v779
        %789 = vmatpush.bf16.msra.mxu0 %v778
        %790 = vmatmul.bf16.gmra.mxu0 %v498
        %v791 = vpop.f32.mrf.mxu0
        %v792 = vadd.f32 0.0, %v791
        %v793 = vpop.f32.mrf.mxu0
        %794 = vdwg.mxu0
        %v799 = vunpack.c.l.b16 %v716
        %v800 = vunpack.c.l.b16 %v717
        %v801 = vunpack.c.l.b16 %v718
        %v802 = vunpack.c.l.b16 %v719
        %v803 = vpack.c.b16 %v800, %v799
        %v804 = vpack.c.b16 %v802, %v801
        %807 = vmatpush.bf16.msra.mxu0 0
        %808 = vmatpush.bf16.msra.mxu0 0
        %809 = vmatpush.bf16.msra.mxu0 0
        %810 = vmatpush.bf16.msra.mxu0 0
        %811 = vmatpush.bf16.msra.mxu0 0
        %812 = vmatpush.bf16.msra.mxu0 0
        %813 = vmatpush.bf16.msra.mxu0 %v804
        %814 = vmatpush.bf16.msra.mxu0 %v803
        %815 = vmatmul.bf16.gmra.mxu0 %v498
        %v816 = vpop.f32.mrf.mxu0
        %v817 = vadd.f32 0.0, %v816
        %v818 = vpop.f32.mrf.mxu0
        %819 = vdwg.mxu0
        %v820 = vld [vmem:[%s11] sm:$0xff]
        %v821 = vld [vmem:[%s12] sm:$0xff]
        %v822 = vsub.f32 0.0, %v510
        %v823 = vsub.f32 0.0, %v535
        %v824 = vsub.f32 0.0, %v560
        %v825 = vsub.f32 0.0, %v585
        %830 = vrot.lane.b32.xlu0 %v822, 124
        %v831 = vpop.permute.xlu0 %830
        %832 = vrot.lane.b32.xlu0 %v823, 124
        %v833 = vpop.permute.xlu0 %832
        %834 = vrot.lane.b32.xlu0 %v824, 124
        %v835 = vpop.permute.xlu0 %834
        %836 = vrot.lane.b32.xlu0 %v825, 124
        %v837 = vpop.permute.xlu0 %836
        %846 = vrot.lane.b32.xlu0 %v510, 4
        %v847 = vpop.permute.xlu0 %846
        %848 = vrot.lane.b32.xlu0 %v535, 4
        %v849 = vpop.permute.xlu0 %848
        %850 = vrot.lane.b32.xlu0 %v560, 4
        %v851 = vpop.permute.xlu0 %850
        %852 = vrot.lane.b32.xlu0 %v585, 4
        %v853 = vpop.permute.xlu0 %852
        %vm858 = vcmask 31744
        %v859 = vsel %vm858, %v831, %v847
        %v860 = vsel %vm858, %v833, %v849
        %v861 = vsel %vm858, %v835, %v851
        %v862 = vsel %vm858, %v837, %v853
        %v863 = vmul.f32 %v510, %v820
        %v864 = vmul.f32 %v535, %v820
        %v865 = vmul.f32 %v560, %v820
        %v866 = vmul.f32 %v585, %v820
        %v867 = vmul.f32 %v859, %v821
        %v868 = vmul.f32 %v860, %v821
        %v869 = vmul.f32 %v861, %v821
        %v870 = vmul.f32 %v862, %v821
        %v871 = vadd.f32 %v863, %v867
        %v872 = vadd.f32 %v864, %v868
        %v873 = vadd.f32 %v865, %v869
        %v874 = vadd.f32 %v866, %v870
        %v875 = vmul.f32 %v871, 0.35355338
        %v876 = vmul.f32 %v872, 0.35355338
        %v877 = vmul.f32 %v873, 0.35355338
        %v878 = vmul.f32 %v874, 0.35355338
        %v879 = vsub.f32 0.0, %v626
        %v880 = vsub.f32 0.0, %v651
        %v881 = vsub.f32 0.0, %v676
        %v882 = vsub.f32 0.0, %v701
        %887 = vrot.lane.b32.xlu0 %v879, 124
        %v888 = vpop.permute.xlu0 %887
        %889 = vrot.lane.b32.xlu0 %v880, 124
        %v890 = vpop.permute.xlu0 %889
        %891 = vrot.lane.b32.xlu0 %v881, 124
        %v892 = vpop.permute.xlu0 %891
        %893 = vrot.lane.b32.xlu0 %v882, 124
        %v894 = vpop.permute.xlu0 %893
        %903 = vrot.lane.b32.xlu0 %v626, 4
        %v904 = vpop.permute.xlu0 %903
        %905 = vrot.lane.b32.xlu0 %v651, 4
        %v906 = vpop.permute.xlu0 %905
        %907 = vrot.lane.b32.xlu0 %v676, 4
        %v908 = vpop.permute.xlu0 %907
        %909 = vrot.lane.b32.xlu0 %v701, 4
        %v910 = vpop.permute.xlu0 %909
        %v915 = vsel %vm858, %v888, %v904
        %v916 = vsel %vm858, %v890, %v906
        %v917 = vsel %vm858, %v892, %v908
        %v918 = vsel %vm858, %v894, %v910
        %v919 = vmul.f32 %v626, %v820
        %v920 = vmul.f32 %v651, %v820
        %v921 = vmul.f32 %v676, %v820
        %v922 = vmul.f32 %v701, %v820
        %v923 = vmul.f32 %v915, %v821
        %v924 = vmul.f32 %v916, %v821
        %v925 = vmul.f32 %v917, %v821
        %v926 = vmul.f32 %v918, %v821
        %v927 = vadd.f32 %v919, %v923
        %v928 = vadd.f32 %v920, %v924
        %v929 = vadd.f32 %v921, %v925
        %v930 = vadd.f32 %v922, %v926
        %v931 = vpack.c.bf16 %v875, %v875
        %v932 = vpack.c.bf16 %v876, %v876
        %v933 = vpack.c.bf16 %v877, %v877
        %v934 = vpack.c.bf16 %v878, %v878
        %v935 = vpack.c.bf16 %v927, %v927
        %v936 = vpack.c.bf16 %v928, %v928
        %v937 = vpack.c.bf16 %v929, %v929
        %v938 = vpack.c.bf16 %v930, %v930
        %vm939 = vcmask 64512
        %v941 = vsel %vm939, %v931, 0
        %v944 = vsel %vm939, %v935, 0
        %946 = vmatpush.bf16.xpose.msra.mxu0 0
        %947 = vmatpush.bf16.xpose.msra.mxu0 0
        %948 = vmatpush.bf16.xpose.msra.mxu0 0
        %949 = vmatpush.bf16.xpose.msra.mxu0 0
        %950 = vmatpush.bf16.xpose.msra.mxu0 0
        %951 = vmatpush.bf16.xpose.msra.mxu0 0
        %952 = vmatpush.bf16.xpose.msra.mxu0 0
        %953 = vmatpush.bf16.xpose.msra.mxu0 %v944
        %954 = vmatmul.bf16.gmra.mxu0 %v941
        %v955 = vpop.f32.mrf.mxu0
        %v956 = vadd.f32 0.0, %v955
        %v957 = vpop.f32.mrf.mxu0
        %958 = vdwg.mxu0
        %v960 = vsel %vm939, %v932, 0
        %v963 = vsel %vm939, %v936, 0
        %965 = vmatpush.bf16.xpose.msra.mxu0 0
        %966 = vmatpush.bf16.xpose.msra.mxu0 0
        %967 = vmatpush.bf16.xpose.msra.mxu0 0
        %968 = vmatpush.bf16.xpose.msra.mxu0 0
        %969 = vmatpush.bf16.xpose.msra.mxu0 0
        %970 = vmatpush.bf16.xpose.msra.mxu0 0
        %971 = vmatpush.bf16.xpose.msra.mxu0 0
        %972 = vmatpush.bf16.xpose.msra.mxu0 %v963
        %973 = vmatmul.bf16.gmra.mxu0 %v960
        %v974 = vpop.f32.mrf.mxu0
        %v975 = vadd.f32 0.0, %v974
        %v976 = vpop.f32.mrf.mxu0
        %977 = vdwg.mxu0
        %v979 = vsel %vm939, %v933, 0
        %v982 = vsel %vm939, %v937, 0
        %984 = vmatpush.bf16.xpose.msra.mxu0 0
        %985 = vmatpush.bf16.xpose.msra.mxu0 0
        %986 = vmatpush.bf16.xpose.msra.mxu0 0
        %987 = vmatpush.bf16.xpose.msra.mxu0 0
        %988 = vmatpush.bf16.xpose.msra.mxu0 0
        %989 = vmatpush.bf16.xpose.msra.mxu0 0
        %990 = vmatpush.bf16.xpose.msra.mxu0 0
        %991 = vmatpush.bf16.xpose.msra.mxu0 %v982
        %992 = vmatmul.bf16.gmra.mxu0 %v979
        %v993 = vpop.f32.mrf.mxu0
        %v994 = vadd.f32 0.0, %v993
        %v995 = vpop.f32.mrf.mxu0
        %996 = vdwg.mxu0
        %v998 = vsel %vm939, %v934, 0
        %v1001 = vsel %vm939, %v938, 0
        %1003 = vmatpush.bf16.xpose.msra.mxu0 0
        %1004 = vmatpush.bf16.xpose.msra.mxu0 0
        %1005 = vmatpush.bf16.xpose.msra.mxu0 0
        %1006 = vmatpush.bf16.xpose.msra.mxu0 0
        %1007 = vmatpush.bf16.xpose.msra.mxu0 0
        %1008 = vmatpush.bf16.xpose.msra.mxu0 0
        %1009 = vmatpush.bf16.xpose.msra.mxu0 0
        %1010 = vmatpush.bf16.xpose.msra.mxu0 %v1001
        %1011 = vmatmul.bf16.gmra.mxu0 %v998
        %v1012 = vpop.f32.mrf.mxu0
        %v1013 = vadd.f32 0.0, %v1012
        %v1014 = vpop.f32.mrf.mxu0
        %1015 = vdwg.mxu0
        %v1016 = vlaneseq
        %v1017 = vshrl.u32 %v1016, 7
        %v1018 = vlaneseq
        %v1019 = vand.u32 %v1018, 127
        %vm1020 = vcmp.le.s32.totalorder %v1019, %v1017
        %v1021 = vsel %vm1020, 1, 0
        %vm1022 = vcmp.eq.s32.totalorder %v1021, 1
        %v1023 = vsel %vm1022, %v956, -1e+30
        %v1024 = vsel %vm1022, %v975, -1e+30
        %v1025 = vsel %vm1022, %v994, -1e+30
        %v1026 = vsel %vm1022, %v1013, -1e+30
        %v1027 = vsel %vm939, %v1023, -inf
        %1028 = vmax.xlane.f32.xlu0 %v1027
        %v1029 = vpop.xlane.xlu0 %1028
        %v1030 = vsel %vm939, %v1024, -inf
        %1031 = vmax.xlane.f32.xlu0 %v1030
        %v1032 = vpop.xlane.xlu0 %1031
        %v1033 = vsel %vm939, %v1025, -inf
        %1034 = vmax.xlane.f32.xlu0 %v1033
        %v1035 = vpop.xlane.xlu0 %1034
        %v1036 = vsel %vm939, %v1026, -inf
        %1037 = vmax.xlane.f32.xlu0 %v1036
        %v1038 = vpop.xlane.xlu0 %1037
        %v1039 = vsub.f32 %v1023, %v1029
        %v1040 = vsub.f32 %v1024, %v1032
        %v1041 = vsub.f32 %v1025, %v1035
        %v1042 = vsub.f32 %v1026, %v1038
        %v1043 = vmul.f32 %v1039, 1.442695
        %v1044 = vpow.pop %v1043
        %v1045 = vmul.f32 %v1040, 1.442695
        %v1046 = vpow.pop %v1045
        %v1047 = vmul.f32 %v1041, 1.442695
        %v1048 = vpow.pop %v1047
        %v1049 = vmul.f32 %v1042, 1.442695
        %v1050 = vpow.pop %v1049
        %v1051 = vsel %vm939, %v1044, 0.0
        %1052 = vadd.xlane.f32.xlu0 %v1051
        %v1053 = vpop.xlane.xlu0 %1052
        %v1054 = vsel %vm939, %v1046, 0.0
        %1055 = vadd.xlane.f32.xlu0 %v1054
        %v1056 = vpop.xlane.xlu0 %1055
        %v1057 = vsel %vm939, %v1048, 0.0
        %1058 = vadd.xlane.f32.xlu0 %v1057
        %v1059 = vpop.xlane.xlu0 %1058
        %v1060 = vsel %vm939, %v1050, 0.0
        %1061 = vadd.xlane.f32.xlu0 %v1060
        %v1062 = vpop.xlane.xlu0 %1061
        %v1063 = vrcp.pop %v1053
        %v1064 = vrcp.pop %v1056
        %v1065 = vrcp.pop %v1059
        %v1066 = vrcp.pop %v1062
        %v1067 = vmul.f32 %v1044, %v1063
        %v1068 = vmul.f32 %v1046, %v1064
        %v1069 = vmul.f32 %v1048, %v1065
        %v1070 = vmul.f32 %v1050, %v1066
        %v1071 = vpack.c.bf16 %v1067, %v1067
        %v1072 = vpack.c.bf16 %v1068, %v1068
        %v1073 = vpack.c.bf16 %v1069, %v1069
        %v1074 = vpack.c.bf16 %v1070, %v1070
        %v1075 = vpack.c.bf16 %v742, %v742
        %v1076 = vpack.c.bf16 %v767, %v767
        %v1077 = vpack.c.bf16 %v792, %v792
        %v1078 = vpack.c.bf16 %v817, %v817
        %v1080 = vsel %vm939, %v1071, 0
        %vm1082 = vcmask 1043456
        %v1084 = vsel %vm1082, %v1075, 0
        %1086 = vmatpush.bf16.msra.mxu0 0
        %1087 = vmatpush.bf16.msra.mxu0 0
        %1088 = vmatpush.bf16.msra.mxu0 0
        %1089 = vmatpush.bf16.msra.mxu0 0
        %1090 = vmatpush.bf16.msra.mxu0 0
        %1091 = vmatpush.bf16.msra.mxu0 0
        %1092 = vmatpush.bf16.msra.mxu0 0
        %1093 = vmatpush.bf16.msra.mxu0 %v1084
        %1094 = vmatmul.bf16.gmra.mxu0 %v1080
        %v1095 = vpop.f32.mrf.mxu0
        %v1096 = vadd.f32 0.0, %v1095
        %v1097 = vpop.f32.mrf.mxu0
        %1098 = vdwg.mxu0
        %v1100 = vsel %vm939, %v1072, 0
        %v1103 = vsel %vm1082, %v1076, 0
        %1105 = vmatpush.bf16.msra.mxu0 0
        %1106 = vmatpush.bf16.msra.mxu0 0
        %1107 = vmatpush.bf16.msra.mxu0 0
        %1108 = vmatpush.bf16.msra.mxu0 0
        %1109 = vmatpush.bf16.msra.mxu0 0
        %1110 = vmatpush.bf16.msra.mxu0 0
        %1111 = vmatpush.bf16.msra.mxu0 0
        %1112 = vmatpush.bf16.msra.mxu0 %v1103
        %1113 = vmatmul.bf16.gmra.mxu0 %v1100
        %v1114 = vpop.f32.mrf.mxu0
        %v1115 = vadd.f32 0.0, %v1114
        %v1116 = vpop.f32.mrf.mxu0
        %1117 = vdwg.mxu0
        %v1119 = vsel %vm939, %v1073, 0
        %v1122 = vsel %vm1082, %v1077, 0
        %1124 = vmatpush.bf16.msra.mxu0 0
        %1125 = vmatpush.bf16.msra.mxu0 0
        %1126 = vmatpush.bf16.msra.mxu0 0
        %1127 = vmatpush.bf16.msra.mxu0 0
        %1128 = vmatpush.bf16.msra.mxu0 0
        %1129 = vmatpush.bf16.msra.mxu0 0
        %1130 = vmatpush.bf16.msra.mxu0 0
        %1131 = vmatpush.bf16.msra.mxu0 %v1122
        %1132 = vmatmul.bf16.gmra.mxu0 %v1119
        %v1133 = vpop.f32.mrf.mxu0
        %v1134 = vadd.f32 0.0, %v1133
        %v1135 = vpop.f32.mrf.mxu0
        %1136 = vdwg.mxu0
        %v1138 = vsel %vm939, %v1074, 0
        %v1141 = vsel %vm1082, %v1078, 0
        %1143 = vmatpush.bf16.msra.mxu0 0
        %1144 = vmatpush.bf16.msra.mxu0 0
        %1145 = vmatpush.bf16.msra.mxu0 0
        %1146 = vmatpush.bf16.msra.mxu0 0
        %1147 = vmatpush.bf16.msra.mxu0 0
        %1148 = vmatpush.bf16.msra.mxu0 0
        %1149 = vmatpush.bf16.msra.mxu0 0
        %1150 = vmatpush.bf16.msra.mxu0 %v1141
        %1151 = vmatmul.bf16.gmra.mxu0 %v1138
        %v1152 = vpop.f32.mrf.mxu0
        %v1153 = vadd.f32 0.0, %v1152
        %v1154 = vpop.f32.mrf.mxu0
        %1155 = vdwg.mxu0
        %v1156 = vpack.c.bf16 %v1096, %v1096
        %v1157 = vpack.c.bf16 %v1115, %v1115
        %v1158 = vpack.c.bf16 %v1134, %v1134
        %v1159 = vpack.c.bf16 %v1153, %v1153
        %v1160 = vld [vmem:[%s4] sm:$0xf]
        %v1161 = vld [vmem:[%s4 + $0x4] sm:$0xf]
        %v1162 = vld [vmem:[%s4 + $0x8] sm:$0xf]
        %v1163 = vld [vmem:[%s4 + $0xc] sm:$0xf]
        %v1165 = vsel %vm939, %v1156, 0
        %v1168 = vsel %vm1082, %v1160, 0
        %1170 = vmatpush.bf16.msra.mxu0 0
        %1171 = vmatpush.bf16.msra.mxu0 0
        %1172 = vmatpush.bf16.msra.mxu0 0
        %1173 = vmatpush.bf16.msra.mxu0 0
        %1174 = vmatpush.bf16.msra.mxu0 0
        %1175 = vmatpush.bf16.msra.mxu0 0
        %1176 = vmatpush.bf16.msra.mxu0 0
        %1177 = vmatpush.bf16.msra.mxu0 %v1168
        %1178 = vmatmul.bf16.gmra.mxu0 %v1165
        %v1179 = vpop.f32.mrf.mxu0
        %v1180 = vadd.f32 0.0, %v1179
        %v1181 = vpop.f32.mrf.mxu0
        %1182 = vdwg.mxu0
        %v1184 = vsel %vm939, %v1157, 0
        %v1187 = vsel %vm1082, %v1161, 0
        %1189 = vmatpush.bf16.msra.mxu0 0
        %1190 = vmatpush.bf16.msra.mxu0 0
        %1191 = vmatpush.bf16.msra.mxu0 0
        %1192 = vmatpush.bf16.msra.mxu0 0
        %1193 = vmatpush.bf16.msra.mxu0 0
        %1194 = vmatpush.bf16.msra.mxu0 0
        %1195 = vmatpush.bf16.msra.mxu0 0
        %1196 = vmatpush.bf16.msra.mxu0 %v1187
        %1197 = vmatmul.bf16.gmra.mxu0 %v1184
        %v1198 = vpop.f32.mrf.mxu0
        %v1199 = vadd.f32 0.0, %v1198
        %v1200 = vpop.f32.mrf.mxu0
        %1201 = vdwg.mxu0
        %v1203 = vsel %vm939, %v1158, 0
        %v1206 = vsel %vm1082, %v1162, 0
        %1208 = vmatpush.bf16.msra.mxu0 0
        %1209 = vmatpush.bf16.msra.mxu0 0
        %1210 = vmatpush.bf16.msra.mxu0 0
        %1211 = vmatpush.bf16.msra.mxu0 0
        %1212 = vmatpush.bf16.msra.mxu0 0
        %1213 = vmatpush.bf16.msra.mxu0 0
        %1214 = vmatpush.bf16.msra.mxu0 0
        %1215 = vmatpush.bf16.msra.mxu0 %v1206
        %1216 = vmatmul.bf16.gmra.mxu0 %v1203
        %v1217 = vpop.f32.mrf.mxu0
        %v1218 = vadd.f32 0.0, %v1217
        %v1219 = vpop.f32.mrf.mxu0
        %1220 = vdwg.mxu0
        %v1222 = vsel %vm939, %v1159, 0
        %v1225 = vsel %vm1082, %v1163, 0
        %1227 = vmatpush.bf16.msra.mxu0 0
        %1228 = vmatpush.bf16.msra.mxu0 0
        %1229 = vmatpush.bf16.msra.mxu0 0
        %1230 = vmatpush.bf16.msra.mxu0 0
        %1231 = vmatpush.bf16.msra.mxu0 0
        %1232 = vmatpush.bf16.msra.mxu0 0
        %1233 = vmatpush.bf16.msra.mxu0 0
        %1234 = vmatpush.bf16.msra.mxu0 %v1225
        %1235 = vmatmul.bf16.gmra.mxu0 %v1222
        %v1236 = vpop.f32.mrf.mxu0
        %v1237 = vadd.f32 0.0, %v1236
        %v1238 = vpop.f32.mrf.mxu0
        %1239 = vdwg.mxu0
        %v1240 = vsel %vm439, %v1180, 0.0
        %v1241 = vsel %vm439, %v1199, 0.0
        %v1242 = vadd.f32 %v1240, %v1241
        %v1243 = vsel %vm439, %v1218, 0.0
        %v1244 = vadd.f32 %v1242, %v1243
        %v1245 = vsel %vm439, %v1237, 0.0
        %v1246 = vadd.f32 %v1244, %v1245
        %v1247 = vld [vmem:[%s5] sm:$0x1]
        %v1249 = vperm.slane %v1247, 0
        %v1251 = vadd.f32 %v1246, %v1249
        %v1252 = vadd.f32 %v1251, %v437
        %v1253 = vmul.f32 %v1252, %v1252
        %v1254 = vsel %vm439, %v1253, 0.0
        %1255 = vadd.xlane.f32.xlu0 %v1254
        %v1256 = vpop.xlane.xlu0 %1255
        %v1257 = vmul.f32 %v1256, %v449
        %v1258 = vadd.f32 %v1257, 1e-05
        %v1259 = vrsqrt.pop %v1258
        %v1260 = vmul.f32 %v1259, %v1258
        %v1261 = vmul.f32 %v1260, %v1259
        %v1262 = vmul.f32 0.5, %v1261
        %v1263 = vsub.f32 1.5, %v1262
        %v1264 = vmul.f32 %v1259, %v1263
        %vm1265 = vweird.f32 %v1258
        %vm1266 = vweird.f32 %v1259
        %vm1267 = vmor %vm1265, %vm1266
        %v1268 = vsel %vm1267, %v1259, %v1264
        %v1269 = vmul.f32 %v1252, %v1268
        %v1270 = vld [vmem:[%s7] sm:$0x1]
        %v1272 = vperm.slane %v1270, 0
        %v1274 = vmul.f32 %v1269, %v1272
        %v1275 = vpack.c.bf16 %v1274, %v1274
        %v1276 = vld [vmem:[%s8] sm:$0xf]
        %v1277 = vld [vmem:[%s8 + $0x4] sm:$0xf]
        %v1278 = vld [vmem:[%s8 + $0x8] sm:$0xf]
        %v1279 = vld [vmem:[%s8 + $0xc] sm:$0xf]
        %v1284 = vunpack.c.l.b16 %v1276
        %v1285 = vunpack.c.l.b16 %v1277
        %v1286 = vunpack.c.l.b16 %v1278
        %v1287 = vunpack.c.l.b16 %v1279
        %v1288 = vpack.c.b16 %v1285, %v1284
        %v1289 = vpack.c.b16 %v1287, %v1286
        %v1293 = vsel %vm439, %v1275, 0
        %1295 = vmatpush.bf16.msra.mxu0 0
        %1296 = vmatpush.bf16.msra.mxu0 0
        %1297 = vmatpush.bf16.msra.mxu0 0
        %1298 = vmatpush.bf16.msra.mxu0 0
        %1299 = vmatpush.bf16.msra.mxu0 0
        %1300 = vmatpush.bf16.msra.mxu0 0
        %1301 = vmatpush.bf16.msra.mxu0 %v1289
        %1302 = vmatpush.bf16.msra.mxu0 %v1288
        %1303 = vmatmul.bf16.gmra.mxu0 %v1293
        %v1304 = vpop.f32.mrf.mxu0
        %v1305 = vadd.f32 0.0, %v1304
        %v1306 = vpop.f32.mrf.mxu0
        %1307 = vdwg.mxu0
        %v1308 = vld [vmem:[%s9] sm:$0xf]
        %v1309 = vld [vmem:[%s9 + $0x4] sm:$0xf]
        %v1310 = vld [vmem:[%s9 + $0x8] sm:$0xf]
        %v1311 = vld [vmem:[%s9 + $0xc] sm:$0xf]
        %v1316 = vunpack.c.l.b16 %v1308
        %v1317 = vunpack.c.l.b16 %v1309
        %v1318 = vunpack.c.l.b16 %v1310
        %v1319 = vunpack.c.l.b16 %v1311
        %v1320 = vpack.c.b16 %v1317, %v1316
        %v1321 = vpack.c.b16 %v1319, %v1318
        %1324 = vmatpush.bf16.msra.mxu0 0
        %1325 = vmatpush.bf16.msra.mxu0 0
        %1326 = vmatpush.bf16.msra.mxu0 0
        %1327 = vmatpush.bf16.msra.mxu0 0
        %1328 = vmatpush.bf16.msra.mxu0 0
        %1329 = vmatpush.bf16.msra.mxu0 0
        %1330 = vmatpush.bf16.msra.mxu0 %v1321
        %1331 = vmatpush.bf16.msra.mxu0 %v1320
        %1332 = vmatmul.bf16.gmra.mxu0 %v1293
        %v1333 = vpop.f32.mrf.mxu0
        %v1334 = vadd.f32 0.0, %v1333
        %v1335 = vpop.f32.mrf.mxu0
        %1336 = vdwg.mxu0
        %v1337 = vxor.u32 %v1305, 2147483648
        %v1338 = vmul.f32 %v1337, 1.442695
        %v1339 = vpow.pop %v1338
        %v1340 = vadd.f32 %v1339, 1.0
        %v1341 = vrcp.pop %v1340
        %v1342 = vmul.f32 %v1340, %v1341
        %v1343 = vsub.f32 1.0, %v1342
        %v1344 = vmul.f32 %v1341, %v1343
        %v1345 = vadd.f32 %v1341, %v1344
        %vm1346 = vweird.f32 %v1340
        %vm1347 = vweird.f32 %v1341
        %vm1348 = vmor %vm1346, %vm1347
        %v1349 = vsel %vm1348, %v1341, %v1345
        %v1350 = vand.u32 2147483647, %v1340
        %vm1351 = vcmp.eq.f32.partialorder %v1350, 8.507059e+37
        %v1352 = vand.u32 %v1340, 2147483648
        %v1353 = vor.u32 1.1754944e-38, %v1352
        %v1354 = vsel %vm1351, %v1353, %v1349
        %v1355 = vmul.f32 1.0, %v1354
        %v1356 = vmul.f32 %v1305, %v1355
        %v1357 = vmul.f32 %v1356, %v1334
        %v1358 = vpack.c.bf16 %v1357, %v1357
        %v1359 = vld [vmem:[%s10] sm:$0xf]
        %v1360 = vld [vmem:[%s10 + $0x4] sm:$0xf]
        %v1361 = vld [vmem:[%s10 + $0x8] sm:$0xf]
        %v1362 = vld [vmem:[%s10 + $0xc] sm:$0xf]
        %v1363 = vld [vmem:[%s10 + $0x10] sm:$0xf]
        %v1364 = vld [vmem:[%s10 + $0x14] sm:$0xf]
        %v1365 = vld [vmem:[%s10 + $0x18] sm:$0xf]
        %v1366 = vld [vmem:[%s10 + $0x1c] sm:$0xf]
        %v1375 = vunpack.c.l.b16 %v1359
        %v1376 = vunpack.c.l.b16 %v1360
        %v1377 = vunpack.c.l.b16 %v1361
        %v1378 = vunpack.c.l.b16 %v1362
        %v1379 = vunpack.c.l.b16 %v1363
        %v1380 = vunpack.c.l.b16 %v1364
        %v1381 = vunpack.c.l.b16 %v1365
        %v1382 = vunpack.c.l.b16 %v1366
        %v1383 = vpack.c.b16 %v1376, %v1375
        %v1384 = vpack.c.b16 %v1378, %v1377
        %v1385 = vpack.c.b16 %v1380, %v1379
        %v1386 = vpack.c.b16 %v1382, %v1381
        %vm1391 = vcmask 523264
        %v1393 = vsel %vm1391, %v1358, 0
        %1395 = vmatpush.bf16.msra.mxu0 0
        %1396 = vmatpush.bf16.msra.mxu0 0
        %1397 = vmatpush.bf16.msra.mxu0 0
        %1398 = vmatpush.bf16.msra.mxu0 0
        %1399 = vmatpush.bf16.msra.mxu0 %v1386
        %1400 = vmatpush.bf16.msra.mxu0 %v1385
        %1401 = vmatpush.bf16.msra.mxu0 %v1384
        %1402 = vmatpush.bf16.msra.mxu0 %v1383
        %1403 = vmatmul.bf16.gmra.mxu0 %v1393
        %v1404 = vpop.f32.mrf.mxu0
        %v1405 = vadd.f32 %v1252, %v1404
        %v1406 = vpop.f32.mrf.mxu0
        %1407 = vdwg.mxu0
        %1408 = vst.msk [vmem:[%s431] sm:$0xff] %vm439, %v1405
        %s1409 = sand.u32 %s313, 1
        %s1410 = scalar_lea.sflag [#allocation3], %s1409
        %s1411 = sand.u32 %s313, 1
        %s1412 = smul.addr %s1411, 8
        %s1413 = scalar_lea.vmem [#allocation2], %s1412
        // Predicated region
        $region73: #{transformer_block.1} parent=71 // pred_check
          %p1414 = pneg %p323
        $region74: #{transformer_block.1} parent=71 // pred_check_branch
          %1416 = sbr.rel (%p1414) target = $region76
        $region75: #{transformer_block.1} parent=71 // pred_region
          %1418 = vsyncadd %s1410, 0
          %s1419 = smul.addr %s27, 8
          %s1420 = scalar_lea.hbm %s13, %s1419
          %s1422 = sshll.u32 %s1413, 4
          %s1423 = int_to_ptr.vmem [resolvable:$true] %s1422
          %s1424 = sshll.u32 %s1420, 4
          %s1425 = int_to_ptr.hbm [resolvable:$true] %s1424
          %1427 = dma.vmem_to_hbm [thread:$0]  %s1423, 128, %s1425, %s1410
        $region76: #{transformer_block.1} parent=71 // pred_fallthru
          _
      $region72: #{transformer_block.1} parent=5 // pred_fallthru
        _
      %p1428 = scmp.le.s32.totalorder 2, %s22
      // Predicated region
      $region77: #{transformer_block.1} parent=5 // pred_check
        %p1429 = pneg %p1428
      $region78: #{transformer_block.1} parent=5 // pred_check_branch
        %1431 = sbr.rel (%p1429) target = $region80
      $region79: #{transformer_block.1} parent=5 // pred_region
        %s1432 = ssub.s32 %s22, 2
        // Predicated region
        $region81: #{transformer_block.1} parent=79 // pred_check
          %p1433 = pneg %p329
        $region82: #{transformer_block.1} parent=79 // pred_check_branch
          %1435 = sbr.rel (%p1433) target = $region84
        $region83: #{transformer_block.1} parent=79 // pred_region
          %s1436 = sand.u32 %s314, 1
          %s1437 = scalar_lea.sflag [#allocation3], %s1436
          %s1438 = sand.u32 %s314, 1
          %s1439 = smul.addr %s1438, 8
          %s1440 = scalar_lea.vmem [#allocation2], %s1439
          %1442 = dma.done %s1437, 128
        $region84: #{transformer_block.1} parent=79 // pred_fallthru
          _
      $region80: #{transformer_block.1} parent=5 // pred_fallthru
        _
    $region6: #{transformer_block.1} parent=1 // loop_footer
      %s26 = sadd.s32 1, %s22
    $region7: #{transformer_block.1} parent=1 // loop_footer_branch
      %21 = sbr.rel target = $region3
    $region8: #{transformer_block.1} parent=1 // loop_exit
      _
    %1443 = vsyncpa [#allocation3], 1
    %s1444 = scalar_lea.sflag [#allocation3], 1
    %1445 = vsyncpa %s1444, 1

</llo_original>
